<compile_context>
chip_gen: v5e
topology: v5e:2x2
jax: 0.10.0
libtpu: 0.0.40
codegen_flags: <defaults>
</compile_context>

<pallas_src>
import functools

import jax
import jax.numpy as jnp
from jax.experimental import pallas as pl
from jax.experimental.pallas import tpu as pltpu

EPS = 1e-7


def _round_up(x, m):
    return ((x + m - 1) // m) * m


def _f1_loss_kernel(logits_ref, labels_ref, out_ref,
                    tp_ref, sp_ref, cnt_ref, *, n, eps):
    i = pl.program_id(0)
    c, tile_n = logits_ref.shape

    @pl.when(i == 0)
    def _init():
        tp_ref[...] = jnp.zeros_like(tp_ref)
        sp_ref[...] = jnp.zeros_like(sp_ref)
        cnt_ref[...] = jnp.zeros_like(cnt_ref)

    # ---- load (lane-dense) tile; upcast to f32 inside the kernel ----
    logits = logits_ref[...].astype(jnp.float32)            # (C, tn)
    labels = labels_ref[...]                                 # (1, tn) int32

    # ---- tail mask for the (possibly partial) last tile ----
    col = jax.lax.broadcasted_iota(jnp.int32, (1, tile_n), 1) + i * tile_n
    valid = col < n                                          # (1, tn) bool
    vmask = valid.astype(jnp.float32)

    # Kill any garbage from out-of-bounds rows before the exp.
    logits = jnp.where(valid, logits, 0.0)

    # ---- softmax over the class (sublane) axis ----
    m = jnp.max(logits, axis=0, keepdims=True)               # (1, tn)
    e = jnp.exp(logits - m)                                   # (C, tn)
    s = jnp.sum(e, axis=0, keepdims=True)                     # (1, tn)
    p = e * (1.0 / s)                                         # one divide/col
    p = p * vmask                                             # zero padded cols

    # ---- one-hot(y_true) with the tail mask folded in ----
    class_ids = jax.lax.broadcasted_iota(jnp.int32, (c, tile_n), 0)
    y = (class_ids == labels).astype(jnp.float32) * vmask     # (C, tn)

    # ---- element-wise accumulation (pure VPU adds; no per-step reduction) --
    tp_ref[...] += y * p
    sp_ref[...] += p
    cnt_ref[...] += y

    @pl.when(i == pl.num_programs(0) - 1)
    def _finalize():
        # Cross-lane reductions happen exactly once, here.
        tp = jnp.sum(tp_ref[...], axis=1, keepdims=True)      # (C, 1)
        sp = jnp.sum(sp_ref[...], axis=1, keepdims=True)      # sum(p)  = tp+fp
        cnt = jnp.sum(cnt_ref[...], axis=1, keepdims=True)    # sum(y)  = tp+fn
        precision = tp / (sp + eps)
        recall = tp / (cnt + eps)
        f1 = 2.0 * (precision * recall) / (precision + recall + eps)
        f1 = jnp.clip(f1, eps, 1.0 - eps)
        loss = 1.0 - jnp.mean(f1)
        out_ref[...] = jnp.full((1, 1), loss, dtype=jnp.float32)


def f1_loss(y_pred, y_true, classes=3, epsilon=EPS, tile_n=2048):
    """Pallas equivalent of F1Loss(classes, epsilon).forward(y_pred, y_true)."""
    assert y_pred.ndim == 2
    assert y_true.ndim == 1
    n, c = y_pred.shape
    assert c == classes

    # Lane-dense layout: batch on the last (lane) axis.
    logits_t = jnp.transpose(y_pred)                          # (C, N), native dtype
    labels2d = y_true.astype(jnp.int32).reshape(1, n)         # (1, N)

    # Tile size: large, multiple of 128 lanes, no bigger than the padded batch.
    tile_n = max(128, min(_round_up(tile_n, 128), _round_up(n, 128)))
    num_tiles = pl.cdiv(n, tile_n)

    kernel = functools.partial(_f1_loss_kernel, n=n, eps=epsilon)

    out = pl.pallas_call(
        kernel,
        out_shape=jax.ShapeDtypeStruct((1, 1), jnp.float32),
        grid_spec=pltpu.PrefetchScalarGridSpec(
            num_scalar_prefetch=0,
            grid=(num_tiles,),
            in_specs=[
                pl.BlockSpec((c, tile_n), lambda i: (0, i)),   # logits (C, N)
                pl.BlockSpec((1, tile_n), lambda i: (0, i)),   # labels (1, N)
            ],
            out_specs=pl.BlockSpec((1, 1), lambda i: (0, 0)),
            scratch_shapes=[
                pltpu.VMEM((c, tile_n), jnp.float32),  # tp partials
                pltpu.VMEM((c, tile_n), jnp.float32),  # sum(p) partials
                pltpu.VMEM((c, tile_n), jnp.float32),  # count partials
            ],
        ),
        compiler_params=pltpu.CompilerParams(
            dimension_semantics=("arbitrary",)),
    )(logits_t, labels2d)
    return out[0, 0]


def _f1_loss_ref(y_pred, y_true, classes=3, epsilon=EPS):
    y = jax.nn.one_hot(y_true, classes, dtype=jnp.float32)
    p = jax.nn.softmax(y_pred.astype(jnp.float32), axis=1)
    tp = jnp.sum(y * p, axis=0)
    fp = jnp.sum((1 - y) * p, axis=0)
    fn = jnp.sum(y * (1 - p), axis=0)
    precision = tp / (tp + fp + epsilon)
    recall = tp / (tp + fn + epsilon)
    f1 = 2 * precision * recall / (precision + recall + epsilon)
    f1 = jnp.clip(f1, epsilon, 1 - epsilon)
    return 1.0 - jnp.mean(f1)


if __name__ == "__main__":
    classes = 3
    n = 5000  # deliberately not a multiple of 128/tile_n -> exercises tail mask
    key = jax.random.PRNGKey(0)
    k1, k2 = jax.random.split(key)
    y_pred = jax.random.normal(k1, (n, classes), dtype=jnp.float32)
    y_true = jax.random.randint(k2, (n,), 0, classes, dtype=jnp.int32)

    loss = f1_loss(y_pred, y_true, classes=classes)
    loss = jax.block_until_ready(loss)

    ref = _f1_loss_ref(y_pred, y_true, classes=classes)
    assert jnp.allclose(loss, ref, atol=2e-5, rtol=1e-4), (loss, ref)

    print("KERNEL_OK")
</pallas_src>

<mosaic_0001>
module attributes {stable_mosaic.version = 11 : i64} {
  func.func @_f1_loss_kernel(%arg0: i32, %arg1: memref<3x2048xf32, #tpu.memory_space<vmem>>, %arg2: memref<1x2048xi32, #tpu.memory_space<vmem>>, %arg3: memref<1x1xf32, #tpu.memory_space<vmem>>, %arg4: memref<3x2048xf32, #tpu.memory_space<vmem>>, %arg5: memref<3x2048xf32, #tpu.memory_space<vmem>>, %arg6: memref<3x2048xf32, #tpu.memory_space<vmem>>) attributes {dimension_semantics = [#tpu.dimension_semantics<arbitrary>], iteration_bounds = array<i64: 3>, scalar_prefetch = 0 : i64, scratch_operands = 3 : i64, tpu.core_type = #tpu.core_type<tc>, window_params = [{transform_indices = @transform_0, window_bounds = array<i64: 3, 2048>}, {transform_indices = @transform_1, window_bounds = array<i64: 1, 2048>}, {pipeline_mode = #tpu.pipeline_mode<synchronous>, transform_indices = @transform_2, window_bounds = array<i64: 1, 1>}]} {
    %c0_i32 = arith.constant 0 : i32
    %0 = arith.cmpi eq, %arg0, %c0_i32 : i32
    %1 = arith.extui %0 : i1 to i32
    %c0_i32_0 = arith.constant 0 : i32
    %2 = arith.cmpi ne, %1, %c0_i32_0 : i32
    scf.if %2 {
      %cst_20 = arith.constant 0.000000e+00 : f32
      %50 = vector.broadcast %cst_20 : f32 to vector<3x2048xf32>
      %c0_21 = arith.constant 0 : index
      %c0_22 = arith.constant 0 : index
      %51 = vector.load %arg4[%c0_21, %c0_22] : memref<3x2048xf32, #tpu.memory_space<vmem>>, vector<3x2048xf32>
      tpu.vector_store %arg4[%c0_21, %c0_22], %50 {strides = array<i32>} : memref<3x2048xf32, #tpu.memory_space<vmem>>, vector<3x2048xf32>,
      %cst_23 = arith.constant 0.000000e+00 : f32
      %52 = vector.broadcast %cst_23 : f32 to vector<3x2048xf32>
      %c0_24 = arith.constant 0 : index
      %c0_25 = arith.constant 0 : index
      %53 = vector.load %arg5[%c0_24, %c0_25] : memref<3x2048xf32, #tpu.memory_space<vmem>>, vector<3x2048xf32>
      tpu.vector_store %arg5[%c0_24, %c0_25], %52 {strides = array<i32>} : memref<3x2048xf32, #tpu.memory_space<vmem>>, vector<3x2048xf32>,
      %cst_26 = arith.constant 0.000000e+00 : f32
      %54 = vector.broadcast %cst_26 : f32 to vector<3x2048xf32>
      %c0_27 = arith.constant 0 : index
      %c0_28 = arith.constant 0 : index
      %55 = vector.load %arg6[%c0_27, %c0_28] : memref<3x2048xf32, #tpu.memory_space<vmem>>, vector<3x2048xf32>
      tpu.vector_store %arg6[%c0_27, %c0_28], %54 {strides = array<i32>} : memref<3x2048xf32, #tpu.memory_space<vmem>>, vector<3x2048xf32>,
    } else {
    }
    %c0 = arith.constant 0 : index
    %c0_1 = arith.constant 0 : index
    %3 = vector.load %arg1[%c0, %c0_1] : memref<3x2048xf32, #tpu.memory_space<vmem>>, vector<3x2048xf32>
    %c0_2 = arith.constant 0 : index
    %c0_3 = arith.constant 0 : index
    %4 = vector.load %arg2[%c0_2, %c0_3] : memref<1x2048xi32, #tpu.memory_space<vmem>>, vector<1x2048xi32>
    %5 = tpu.iota {dimensions = array<i32: 1>} : vector<1x2048xi32>
    %c2048_i32 = arith.constant 2048 : i32
    %6 = arith.muli %arg0, %c2048_i32 : i32
    %7 = vector.broadcast %6 : i32 to vector<1x2048xi32>
    %8 = arith.addi %5, %7 : vector<1x2048xi32>
    %c5000_i32 = arith.constant 5000 : i32
    %9 = vector.broadcast %c5000_i32 : i32 to vector<1x2048xi32>
    %10 = arith.cmpi slt, %8, %9 : vector<1x2048xi32>
    %11 = arith.extui %10 : vector<1x2048xi1> to vector<1x2048xi32>
    %12 = arith.sitofp %11 : vector<1x2048xi32> to vector<1x2048xf32>
    %cst = arith.constant 0.000000e+00 : f32
    %13 = vector.shape_cast %10 : vector<1x2048xi1> to vector<1x2048xi1>
    %14 = vector.broadcast %13 : vector<1x2048xi1> to vector<3x2048xi1>
    %15 = vector.broadcast %cst : f32 to vector<3x2048xf32>
    %16 = arith.select %14, %3, %15 : vector<3x2048xi1>, vector<3x2048xf32>
    %cst_4 = arith.constant dense<0xFF800000> : vector<2048xf32>
    %17 = vector.multi_reduction <maximumf>, %16, %cst_4 [0] : vector<3x2048xf32> to vector<2048xf32>
    %18 = vector.shape_cast %17 : vector<2048xf32> to vector<1x2048xf32>
    %19 = vector.broadcast %18 : vector<1x2048xf32> to vector<3x2048xf32>
    %20 = arith.subf %16, %19 : vector<3x2048xf32>
    %21 = math.exp %20 : vector<3x2048xf32>
    %cst_5 = arith.constant dense<0.000000e+00> : vector<2048xf32>
    %22 = vector.multi_reduction <add>, %21, %cst_5 [0] : vector<3x2048xf32> to vector<2048xf32>
    %23 = vector.shape_cast %22 : vector<2048xf32> to vector<1x2048xf32>
    %cst_6 = arith.constant 1.000000e+00 : f32
    %24 = vector.broadcast %cst_6 : f32 to vector<1x2048xf32>
    %25 = arith.divf %24, %23 : vector<1x2048xf32>
    %26 = vector.broadcast %25 : vector<1x2048xf32> to vector<3x2048xf32>
    %27 = arith.mulf %21, %26 : vector<3x2048xf32>
    %28 = vector.broadcast %12 : vector<1x2048xf32> to vector<3x2048xf32>
    %29 = arith.mulf %27, %28 : vector<3x2048xf32>
    %30 = tpu.iota {dimensions = array<i32: 0>} : vector<3x2048xi32>
    %31 = vector.broadcast %4 : vector<1x2048xi32> to vector<3x2048xi32>
    %32 = arith.cmpi eq, %30, %31 : vector<3x2048xi32>
    %33 = arith.extui %32 : vector<3x2048xi1> to vector<3x2048xi32>
    %34 = arith.sitofp %33 : vector<3x2048xi32> to vector<3x2048xf32>
    %35 = vector.broadcast %12 : vector<1x2048xf32> to vector<3x2048xf32>
    %36 = arith.mulf %34, %35 : vector<3x2048xf32>
    %c0_7 = arith.constant 0 : index
    %c0_8 = arith.constant 0 : index
    %37 = vector.load %arg4[%c0_7, %c0_8] : memref<3x2048xf32, #tpu.memory_space<vmem>>, vector<3x2048xf32>
    %38 = arith.mulf %36, %29 : vector<3x2048xf32>
    %39 = arith.addf %37, %38 : vector<3x2048xf32>
    %c0_9 = arith.constant 0 : index
    %c0_10 = arith.constant 0 : index
    %40 = vector.load %arg4[%c0_9, %c0_10] : memref<3x2048xf32, #tpu.memory_space<vmem>>, vector<3x2048xf32>
    tpu.vector_store %arg4[%c0_9, %c0_10], %39 {strides = array<i32>} : memref<3x2048xf32, #tpu.memory_space<vmem>>, vector<3x2048xf32>,
    %c0_11 = arith.constant 0 : index
    %c0_12 = arith.constant 0 : index
    %41 = vector.load %arg5[%c0_11, %c0_12] : memref<3x2048xf32, #tpu.memory_space<vmem>>, vector<3x2048xf32>
    %42 = arith.addf %41, %29 : vector<3x2048xf32>
    %c0_13 = arith.constant 0 : index
    %c0_14 = arith.constant 0 : index
    %43 = vector.load %arg5[%c0_13, %c0_14] : memref<3x2048xf32, #tpu.memory_space<vmem>>, vector<3x2048xf32>
    tpu.vector_store %arg5[%c0_13, %c0_14], %42 {strides = array<i32>} : memref<3x2048xf32, #tpu.memory_space<vmem>>, vector<3x2048xf32>,
    %c0_15 = arith.constant 0 : index
    %c0_16 = arith.constant 0 : index
    %44 = vector.load %arg6[%c0_15, %c0_16] : memref<3x2048xf32, #tpu.memory_space<vmem>>, vector<3x2048xf32>
    %45 = arith.addf %44, %36 : vector<3x2048xf32>
    %c0_17 = arith.constant 0 : index
    %c0_18 = arith.constant 0 : index
    %46 = vector.load %arg6[%c0_17, %c0_18] : memref<3x2048xf32, #tpu.memory_space<vmem>>, vector<3x2048xf32>
    tpu.vector_store %arg6[%c0_17, %c0_18], %45 {strides = array<i32>} : memref<3x2048xf32, #tpu.memory_space<vmem>>, vector<3x2048xf32>,
    %c2_i32 = arith.constant 2 : i32
    %47 = arith.cmpi eq, %arg0, %c2_i32 : i32
    %48 = arith.extui %47 : i1 to i32
    %c0_i32_19 = arith.constant 0 : i32
    %49 = arith.cmpi ne, %48, %c0_i32_19 : i32
    scf.if %49 {
      %c0_20 = arith.constant 0 : index
      %c0_21 = arith.constant 0 : index
      %50 = vector.load %arg4[%c0_20, %c0_21] : memref<3x2048xf32, #tpu.memory_space<vmem>>, vector<3x2048xf32>
      %cst_22 = arith.constant dense<0.000000e+00> : vector<3xf32>
      %51 = vector.multi_reduction <add>, %50, %cst_22 [1] : vector<3x2048xf32> to vector<3xf32>
      %52 = vector.shape_cast %51 : vector<3xf32> to vector<3x1xf32>
      %c0_23 = arith.constant 0 : index
      %c0_24 = arith.constant 0 : index
      %53 = vector.load %arg5[%c0_23, %c0_24] : memref<3x2048xf32, #tpu.memory_space<vmem>>, vector<3x2048xf32>
      %cst_25 = arith.constant dense<0.000000e+00> : vector<3xf32>
      %54 = vector.multi_reduction <add>, %53, %cst_25 [1] : vector<3x2048xf32> to vector<3xf32>
      %55 = vector.shape_cast %54 : vector<3xf32> to vector<3x1xf32>
      %c0_26 = arith.constant 0 : index
      %c0_27 = arith.constant 0 : index
      %56 = vector.load %arg6[%c0_26, %c0_27] : memref<3x2048xf32, #tpu.memory_space<vmem>>, vector<3x2048xf32>
      %cst_28 = arith.constant dense<0.000000e+00> : vector<3xf32>
      %57 = vector.multi_reduction <add>, %56, %cst_28 [1] : vector<3x2048xf32> to vector<3xf32>
      %58 = vector.shape_cast %57 : vector<3xf32> to vector<3x1xf32>
      %cst_29 = arith.constant 1.000000e-07 : f32
      %59 = vector.broadcast %cst_29 : f32 to vector<3x1xf32>
      %60 = arith.addf %55, %59 : vector<3x1xf32>
      %61 = arith.divf %52, %60 : vector<3x1xf32>
      %cst_30 = arith.constant 1.000000e-07 : f32
      %62 = vector.broadcast %cst_30 : f32 to vector<3x1xf32>
      %63 = arith.addf %58, %62 : vector<3x1xf32>
      %64 = arith.divf %52, %63 : vector<3x1xf32>
      %65 = arith.mulf %61, %64 : vector<3x1xf32>
      %cst_31 = arith.constant 2.000000e+00 : f32
      %66 = vector.broadcast %cst_31 : f32 to vector<3x1xf32>
      %67 = arith.mulf %66, %65 : vector<3x1xf32>
      %68 = arith.addf %61, %64 : vector<3x1xf32>
      %cst_32 = arith.constant 1.000000e-07 : f32
      %69 = vector.broadcast %cst_32 : f32 to vector<3x1xf32>
      %70 = arith.addf %68, %69 : vector<3x1xf32>
      %71 = arith.divf %67, %70 : vector<3x1xf32>
      %cst_33 = arith.constant 1.000000e-07 : f32
      %cst_34 = arith.constant 0.99999988 : f32
      %72 = vector.broadcast %cst_33 : f32 to vector<3x1xf32>
      %73 = arith.maximumf %72, %71 : vector<3x1xf32>
      %74 = vector.broadcast %cst_34 : f32 to vector<3x1xf32>
      %75 = arith.minimumf %74, %73 : vector<3x1xf32>
      %76 = vector.shape_cast %75 : vector<3x1xf32> to vector<1x3x1xf32>
      %cst_35 = arith.constant dense<0.000000e+00> : vector<1xf32>
      %77 = vector.multi_reduction <add>, %76, %cst_35 [1, 2] : vector<1x3x1xf32> to vector<1xf32>
      %78 = vector.shape_cast %77 : vector<1xf32> to vector<1x1x1xf32>
      %79 = vector.extract %78[0, 0, 0] : f32 from vector<1x1x1xf32>
      %cst_36 = arith.constant 3.000000e+00 : f32
      %80 = arith.divf %79, %cst_36 : f32
      %cst_37 = arith.constant 1.000000e+00 : f32
      %81 = arith.subf %cst_37, %80 : f32
      %82 = vector.broadcast %81 : f32 to vector<1x1xf32>
      %c0_38 = arith.constant 0 : index
      %c0_39 = arith.constant 0 : index
      %83 = vector.load %arg3[%c0_38, %c0_39] : memref<1x1xf32, #tpu.memory_space<vmem>>, vector<1x1xf32>
      tpu.vector_store %arg3[%c0_38, %c0_39], %82 {strides = array<i32>} : memref<1x1xf32, #tpu.memory_space<vmem>>, vector<1x1xf32>,
    } else {
    }
    return
  }
  func.func @transform_0(%arg0: i32) -> (i32, i32) {
    %c0_i32 = arith.constant 0 : i32
    %c0_i32_0 = arith.constant 0 : i32
    return %c0_i32, %arg0 : i32, i32
  }
  func.func @transform_1(%arg0: i32) -> (i32, i32) {
    %c0_i32 = arith.constant 0 : i32
    %c0_i32_0 = arith.constant 0 : i32
    return %c0_i32, %arg0 : i32, i32
  }
  func.func @transform_2(%arg0: i32) -> (i32, i32) {
    %c0_i32 = arith.constant 0 : i32
    %c0_i32_0 = arith.constant 0 : i32
    %c0_i32_1 = arith.constant 0 : i32
    return %c0_i32, %c0_i32_0 : i32, i32
  }
}

</mosaic_0001>

<llo_original>
// kernel: tpu_custom_call.1
$region0: #{tpu_custom_call.1}
  #allocation0 [shape = 'u32[]', space=smem, size = 0x4, offset = 0x4, fixed_abs, tag = 'smem constant byte address 0x4 - core index']
  #allocation1 [shape = 'u32[72,128]{1,0:T(1,128)}', space=vmem, size = 0x9000, scoped, tag = 'internal scratch']
  #allocation2 [shape = 'f32[3,2048]{1,0:T(4,128)}', space=vmem, size = 0x8000, scoped, tag = 'scratch operand']
  #allocation3 [shape = 'f32[3,2048]{1,0:T(4,128)}', space=vmem, size = 0x8000, scoped, tag = 'scratch operand']
  #allocation4 [shape = 'f32[3,2048]{1,0:T(4,128)}', space=vmem, size = 0x8000, scoped, tag = 'scratch operand']
  %s0 = inlined_call_operand.hbm [shape: f32[3,5000], index: 0, kind: input, shape index: {}]
  %s1 = inlined_call_operand.hbm [shape: s32[1,5000], index: 1, kind: input, shape index: {}]
  %s2 = inlined_call_operand.hbm [shape: f32[1,1], index: 2, kind: output, shape index: {}]
  %s3 = sld [smem:[#allocation0]]
  $region57: #{tpu_custom_call.1} parent=0
    _
  %s5 = ssub.s32 1, %s3
  %s6 = scalar_select 0, %s5, %s3
  $region1: #{tpu_custom_call.1} parent=0
    #allocation5 [shape = 'u8[65536]{0}', space=vmem, size = 0x10000, scoped, tag = 'input window, operand 0']
    #allocation6 [shape = 's32[2]{0}', space=sflag, size = 0x8, scoped, tag = 'scoped memory for tpu_custom_call.1']
    #allocation7 [shape = 's32[2]{0}', space=sflag, size = 0x8, scoped, tag = 'scoped memory for tpu_custom_call.1']
    #allocation8 [shape = 'u8[16384]{0}', space=vmem, size = 0x4000, scoped, tag = 'input window, operand 1']
    #allocation9 [shape = 's32[2]{0}', space=sflag, size = 0x8, scoped, tag = 'scoped memory for tpu_custom_call.1']
    #allocation10 [shape = 'u8[512]{0}', space=vmem, size = 0x400, scoped, tag = 'output window, operand 0, single buffered']
    %7 = vsyncpa [#allocation6], 0
    %s8 = scalar_lea.sflag [#allocation6], 1
    %9 = vsyncpa %s8, 0
    %10 = vsyncpa [#allocation9], 0
    %s11 = scalar_lea.sflag [#allocation9], 1
    %12 = vsyncpa %s11, 0
    %13 = vsyncpa [#allocation7], 0
    loop: start=0, step=1, limit=5
    $region2: #{tpu_custom_call.1} parent=1 // loop_pre_header
      _
    $region3: #{tpu_custom_call.1} parent=1 // loop_header
      %s15 = sphi 0, %s19
      %p16 = scmp.ge.s32.totalorder %s15, 5
      %s25 = sphi 0, %s27
      %s28 = sphi 0, %s25
      %s29 = sphi 0, %s28
      %s45 = sphi 0, %s29
      %s51 = sphi 0, %s53
      %s54 = sphi 0, %s51
      %s55 = sphi 0, %s54
      %s71 = sphi 0, %s55
      %s75 = sphi 0, %s75
      %s77 = sphi 0, %s75
      %s78 = sphi 0, %s77
      %s92 = sphi 0, %s78
    $region4: #{tpu_custom_call.1} parent=1 // loop_header_branch
      %18 = sbr.rel (%p16) target = $region8
    $region5: #{tpu_custom_call.1} parent=1 // loop_body
      %s20 = ssub.s32 %s15, 1
      %s21 = ssub.s32 %s15, 2
      %s22 = sadd.s32 %s15, 1
      %s23 = ssub.s32 %s15, %s22
      %p24 = scmp.eq.s32.totalorder %s23, 0
      %s26 = sadd.s32 %s25, 1
      %s27 = scalar_select %p24, %s25, %s26
      %p30 = pneg %p24
      %p31 = scmp.eq.s32.totalorder %s15, 2
      %p32 = por %p30, %p31
      %p33 = scmp.ne.s32.totalorder %s25, %s28
      %p34 = scmp.eq.s32.totalorder %s15, 0
      %p35 = por %p33, %p34
      %p36 = scmp.ne.s32.totalorder %s25, %s28
      %p37 = scmp.eq.s32.totalorder %s20, 2
      %p38 = por %p36, %p37
      %p39 = scmp.ne.s32.totalorder %s28, %s29
      %p40 = scmp.eq.s32.totalorder %s20, 0
      %p41 = por %p39, %p40
      %p42 = scmp.ne.s32.totalorder %s28, %s29
      %p43 = scmp.eq.s32.totalorder %s21, 2
      %p44 = por %p42, %p43
      %p46 = scmp.ne.s32.totalorder %s29, %s45
      %p47 = scmp.eq.s32.totalorder %s21, 0
      %p48 = por %p46, %p47
      %s49 = ssub.s32 %s15, %s22
      %p50 = scmp.eq.s32.totalorder %s49, 0
      %s52 = sadd.s32 %s51, 1
      %s53 = scalar_select %p50, %s51, %s52
      %p56 = pneg %p50
      %p57 = scmp.eq.s32.totalorder %s15, 2
      %p58 = por %p56, %p57
      %p59 = scmp.ne.s32.totalorder %s51, %s54
      %p60 = scmp.eq.s32.totalorder %s15, 0
      %p61 = por %p59, %p60
      %p62 = scmp.ne.s32.totalorder %s51, %s54
      %p63 = scmp.eq.s32.totalorder %s20, 2
      %p64 = por %p62, %p63
      %p65 = scmp.ne.s32.totalorder %s54, %s55
      %p66 = scmp.eq.s32.totalorder %s20, 0
      %p67 = por %p65, %p66
      %p68 = scmp.ne.s32.totalorder %s54, %s55
      %p69 = scmp.eq.s32.totalorder %s21, 2
      %p70 = por %p68, %p69
      %p72 = scmp.ne.s32.totalorder %s55, %s71
      %p73 = scmp.eq.s32.totalorder %s21, 0
      %p74 = por %p72, %p73
      %s76 = sadd.s32 %s75, 1
      %p79 = scmp.eq.s32.totalorder %s15, 2
      %p80 = scmp.ne.s32.totalorder %s75, %s77
      %p81 = scmp.eq.s32.totalorder %s15, 0
      %p82 = por %p80, %p81
      %p83 = scmp.ne.s32.totalorder %s75, %s77
      %p84 = scmp.eq.s32.totalorder %s20, 2
      %p85 = por %p83, %p84
      %p86 = scmp.ne.s32.totalorder %s77, %s78
      %p87 = scmp.eq.s32.totalorder %s20, 0
      %p88 = por %p86, %p87
      %p89 = scmp.ne.s32.totalorder %s77, %s78
      %p90 = scmp.eq.s32.totalorder %s21, 2
      %p91 = por %p89, %p90
      %p93 = scmp.ne.s32.totalorder %s78, %s92
      %p94 = scmp.eq.s32.totalorder %s21, 0
      %p95 = por %p93, %p94
      %p96 = scmp.le.s32.totalorder 1, %s15
      %p97 = scmp.lt.s32.totalorder %s15, 4
      %p98 = pnand %p96, %p97
      %p99 = pneg %p98
      // Predicated region
      $region9: #{tpu_custom_call.1} parent=5 // pred_check
        _
      $region10: #{tpu_custom_call.1} parent=5 // pred_check_branch
        %101 = sbr.rel (%p98) target = $region12
      $region11: #{tpu_custom_call.1} parent=5 // pred_region
        %s102 = ssub.s32 %s15, 1
      $region12: #{tpu_custom_call.1} parent=5 // pred_fallthru
        _
      %p103 = scmp.lt.s32.totalorder %s15, 3
      // Predicated region
      $region13: #{tpu_custom_call.1} parent=5 // pred_check
        %p104 = pneg %p103
      $region14: #{tpu_custom_call.1} parent=5 // pred_check_branch
        %106 = sbr.rel (%p104) target = $region16
      $region15: #{tpu_custom_call.1} parent=5 // pred_region
        // Predicated region
        $region17: #{tpu_custom_call.1} parent=15 // pred_check
          %p107 = pneg %p35
        $region18: #{tpu_custom_call.1} parent=15 // pred_check_branch
          %109 = sbr.rel (%p107) target = $region20
        $region19: #{tpu_custom_call.1} parent=15 // pred_region
          %s110 = sand.u32 %s25, 1
          %s111 = scalar_lea.sflag [#allocation6], %s110
          %s112 = sand.u32 %s25, 1
          %s113 = smul.addr %s112, 64
          %s114 = scalar_lea.vmem [#allocation5], %s113
          %s115 = smul.u32 16, %s15
          %s116 = ssub.s32 40, %s115
          %p117 = scmp.lt.s32.totalorder %s116, 16
          %s118 = scalar_select %p117, %s116, 16
          %s119 = smul.u32 4, %s118
          %s120 = ssub.s32 64, %s119
          %s121 = sshll.u32 %s120, 4
          %122 = vsyncadd %s111, %s121
          %p123 = scmp.ne.s32.totalorder 0, %s119
          %s124 = smul.addr %s115, 4
          %s125 = scalar_lea.hbm %s0, %s124
          %s126 = smul.u32 %s118, 4
          %s127 = sshll.u32 %s126, 4
          %s128 = sshll.u32 %s125, 4
          %s129 = int_to_ptr.hbm [resolvable:$true] %s128
          %s130 = sshll.u32 %s114, 4
          %s131 = int_to_ptr.vmem [resolvable:$true] %s130
          %133 = dma.hbm_to_vmem [thread:$0]  (%p123), %s129, %s127, %s131, %s111
        $region20: #{tpu_custom_call.1} parent=15 // pred_fallthru
          _
        // Predicated region
        $region21: #{tpu_custom_call.1} parent=15 // pred_check
          %p134 = pneg %p61
        $region22: #{tpu_custom_call.1} parent=15 // pred_check_branch
          %136 = sbr.rel (%p134) target = $region24
        $region23: #{tpu_custom_call.1} parent=15 // pred_region
          %s137 = sand.u32 %s51, 1
          %s138 = scalar_lea.sflag [#allocation9], %s137
          %s139 = sand.u32 %s51, 1
          %s140 = smul.addr %s139, 16
          %s141 = scalar_lea.vmem [#allocation8], %s140
          %s142 = smul.u32 16, %s15
          %s143 = ssub.s32 40, %s142
          %p144 = scmp.lt.s32.totalorder %s143, 16
          %s145 = scalar_select %p144, %s143, 16
          %s146 = ssub.s32 16, %s145
          %s147 = sshll.u32 %s146, 4
          %148 = vsyncadd %s138, %s147
          %p149 = scmp.ne.s32.totalorder 0, %s145
          %s150 = scalar_lea.hbm %s1, %s142
          %s151 = sshll.u32 %s145, 4
          %s152 = sshll.u32 %s150, 4
          %s153 = int_to_ptr.hbm [resolvable:$true] %s152
          %s154 = sshll.u32 %s141, 4
          %s155 = int_to_ptr.vmem [resolvable:$true] %s154
          %157 = dma.hbm_to_vmem [thread:$0]  (%p149), %s153, %s151, %s155, %s138
        $region24: #{tpu_custom_call.1} parent=15 // pred_fallthru
          _
      $region16: #{tpu_custom_call.1} parent=5 // pred_fallthru
        _
      %p158 = scmp.le.s32.totalorder 1, %s15
      %p159 = scmp.lt.s32.totalorder %s15, 4
      %p160 = pnand %p158, %p159
      %p161 = pneg %p160
      // Predicated region
      $region25: #{tpu_custom_call.1} parent=5 // pred_check
        _
      $region26: #{tpu_custom_call.1} parent=5 // pred_check_branch
        %163 = sbr.rel (%p160) target = $region28
      $region27: #{tpu_custom_call.1} parent=5 // pred_region
        %s164 = ssub.s32 %s15, 1
        %s165 = sand.u32 %s28, 1
        %s166 = scalar_lea.sflag [#allocation6], %s165
        %s167 = sand.u32 %s28, 1
        %s168 = smul.addr %s167, 64
        %s169 = scalar_lea.vmem [#allocation5], %s168
        // Predicated region
        $region29: #{tpu_custom_call.1} parent=27 // pred_check
          %p170 = pneg %p41
        $region30: #{tpu_custom_call.1} parent=27 // pred_check_branch
          %172 = sbr.rel (%p170) target = $region32
        $region31: #{tpu_custom_call.1} parent=27 // pred_region
          %174 = dma.done %s166, 1024
        $region32: #{tpu_custom_call.1} parent=27 // pred_fallthru
          _
        %s175 = sand.u32 %s54, 1
        %s176 = scalar_lea.sflag [#allocation9], %s175
        %s177 = sand.u32 %s54, 1
        %s178 = smul.addr %s177, 16
        %s179 = scalar_lea.vmem [#allocation8], %s178
        // Predicated region
        $region33: #{tpu_custom_call.1} parent=27 // pred_check
          %p180 = pneg %p67
        $region34: #{tpu_custom_call.1} parent=27 // pred_check_branch
          %182 = sbr.rel (%p180) target = $region36
        $region35: #{tpu_custom_call.1} parent=27 // pred_region
          %184 = dma.done %s176, 256
        $region36: #{tpu_custom_call.1} parent=27 // pred_fallthru
          _
        %s185 = sand.u32 %s28, 1
        %s186 = scalar_lea.sflag [#allocation6], %s185
        %s187 = sand.u32 %s28, 1
        %s188 = smul.addr %s187, 64
        %s189 = scalar_lea.vmem [#allocation5], %s188
        %p190 = pneg %p41
        %p191 = pneg %p38
        %s192 = sand.u32 %s54, 1
        %s193 = scalar_lea.sflag [#allocation9], %s192
        %s194 = sand.u32 %s54, 1
        %s195 = smul.addr %s194, 16
        %s196 = scalar_lea.vmem [#allocation8], %s195
        %p197 = pneg %p67
        %p198 = pneg %p64
        %p199 = pneg %p88
        %p200 = pneg %p85
        %s201 = smul.u32 16, %s20
        %s202 = ssub.s32 40, %s201
        %p203 = scmp.lt.s32.totalorder %s202, 16
        %s204 = scalar_select %p203, %s202, 16
        %s205 = smul.u32 4, %s204
        %s206 = smul.u32 16, %s20
        %s207 = ssub.s32 40, %s206
        %p208 = scmp.lt.s32.totalorder %s207, 16
        %s209 = scalar_select %p208, %s207, 16
        %p210 = scmp.eq.s32.totalorder %s20, 0
        // Predicated region
        $region37: #{tpu_custom_call.1} parent=27 // pred_check
          %p211 = pneg %p210
        $region38: #{tpu_custom_call.1} parent=27 // pred_check_branch
          %213 = sbr.rel (%p211) target = $region40
        $region39: #{tpu_custom_call.1} parent=27 // pred_region
          %214 = vst [vmem:[#allocation2] sm:$0x77] 0.0
          %215 = vst [vmem:[#allocation2 + $0x8] sm:$0x77] 0.0
          %216 = vst [vmem:[#allocation2 + $0x10] sm:$0x77] 0.0
          %217 = vst [vmem:[#allocation2 + $0x18] sm:$0x77] 0.0
          %218 = vst [vmem:[#allocation2 + $0x20] sm:$0x77] 0.0
          %219 = vst [vmem:[#allocation2 + $0x28] sm:$0x77] 0.0
          %220 = vst [vmem:[#allocation2 + $0x30] sm:$0x77] 0.0
          %221 = vst [vmem:[#allocation2 + $0x38] sm:$0x77] 0.0
          %222 = vst [vmem:[#allocation3] sm:$0x77] 0.0
          %223 = vst [vmem:[#allocation3 + $0x8] sm:$0x77] 0.0
          %224 = vst [vmem:[#allocation3 + $0x10] sm:$0x77] 0.0
          %225 = vst [vmem:[#allocation3 + $0x18] sm:$0x77] 0.0
          %226 = vst [vmem:[#allocation3 + $0x20] sm:$0x77] 0.0
          %227 = vst [vmem:[#allocation3 + $0x28] sm:$0x77] 0.0
          %228 = vst [vmem:[#allocation3 + $0x30] sm:$0x77] 0.0
          %229 = vst [vmem:[#allocation3 + $0x38] sm:$0x77] 0.0
          %230 = vst [vmem:[#allocation4] sm:$0x77] 0.0
          %231 = vst [vmem:[#allocation4 + $0x8] sm:$0x77] 0.0
          %232 = vst [vmem:[#allocation4 + $0x10] sm:$0x77] 0.0
          %233 = vst [vmem:[#allocation4 + $0x18] sm:$0x77] 0.0
          %234 = vst [vmem:[#allocation4 + $0x20] sm:$0x77] 0.0
          %235 = vst [vmem:[#allocation4 + $0x28] sm:$0x77] 0.0
          %236 = vst [vmem:[#allocation4 + $0x30] sm:$0x77] 0.0
          %237 = vst [vmem:[#allocation4 + $0x38] sm:$0x77] 0.0
        $region40: #{tpu_custom_call.1} parent=27 // pred_fallthru
          _
        %v238 = vld [vmem:[%s169] sm:$0x77]
        %v239 = vld [vmem:[%s169 + $0x8] sm:$0x77]
        %v240 = vld [vmem:[%s169 + $0x10] sm:$0x77]
        %v241 = vld [vmem:[%s169 + $0x18] sm:$0x77]
        %v242 = vld [vmem:[%s169 + $0x20] sm:$0x77]
        %v243 = vld [vmem:[%s169 + $0x28] sm:$0x77]
        %v244 = vld [vmem:[%s169 + $0x30] sm:$0x77]
        %v245 = vld [vmem:[%s169 + $0x38] sm:$0x77]
        %v246 = vld [vmem:[%s179] sm:$0xff]
        %v247 = vld [vmem:[%s179 + $0x8] sm:$0xff]
        %v248 = vlaneseq
        %v249 = vand.u32 %v248, 127
        %v250 = vadd.s32 %v249, 128
        %v251 = vadd.s32 %v249, 256
        %v252 = vadd.s32 %v249, 384
        %v253 = vadd.s32 %v249, 512
        %v254 = vadd.s32 %v249, 640
        %v255 = vadd.s32 %v249, 768
        %v256 = vadd.s32 %v249, 896
        %v257 = vadd.s32 %v249, 1024
        %v258 = vadd.s32 %v249, 1152
        %v259 = vadd.s32 %v249, 1280
        %v260 = vadd.s32 %v249, 1408
        %v261 = vadd.s32 %v249, 1536
        %v262 = vadd.s32 %v249, 1664
        %v263 = vadd.s32 %v249, 1792
        %v264 = vadd.s32 %v249, 1920
        %s265 = smul.u32 %s20, 2048
        %v266 = vstv %s265
        %v267 = vadd.s32 %v249, %v266
        %v268 = vadd.s32 %v250, %v266
        %v269 = vadd.s32 %v251, %v266
        %v270 = vadd.s32 %v252, %v266
        %v271 = vadd.s32 %v253, %v266
        %v272 = vadd.s32 %v254, %v266
        %v273 = vadd.s32 %v255, %v266
        %v274 = vadd.s32 %v256, %v266
        %v275 = vadd.s32 %v257, %v266
        %v276 = vadd.s32 %v258, %v266
        %v277 = vadd.s32 %v259, %v266
        %v278 = vadd.s32 %v260, %v266
        %v279 = vadd.s32 %v261, %v266
        %v280 = vadd.s32 %v262, %v266
        %v281 = vadd.s32 %v263, %v266
        %v282 = vadd.s32 %v264, %v266
        %vm283 = vcmp.lt.s32.totalorder %v267, 5000
        %vm284 = vcmp.lt.s32.totalorder %v268, 5000
        %vm285 = vcmp.lt.s32.totalorder %v269, 5000
        %vm286 = vcmp.lt.s32.totalorder %v270, 5000
        %vm287 = vcmp.lt.s32.totalorder %v271, 5000
        %vm288 = vcmp.lt.s32.totalorder %v272, 5000
        %vm289 = vcmp.lt.s32.totalorder %v273, 5000
        %vm290 = vcmp.lt.s32.totalorder %v274, 5000
        %vm291 = vcmp.lt.s32.totalorder %v275, 5000
        %vm292 = vcmp.lt.s32.totalorder %v276, 5000
        %vm293 = vcmp.lt.s32.totalorder %v277, 5000
        %vm294 = vcmp.lt.s32.totalorder %v278, 5000
        %vm295 = vcmp.lt.s32.totalorder %v279, 5000
        %vm296 = vcmp.lt.s32.totalorder %v280, 5000
        %vm297 = vcmp.lt.s32.totalorder %v281, 5000
        %vm298 = vcmp.lt.s32.totalorder %v282, 5000
        %v299 = vsel %vm283, 1, 0
        %v300 = vsel %vm284, 1, 0
        %v301 = vsel %vm285, 1, 0
        %v302 = vsel %vm286, 1, 0
        %v303 = vsel %vm287, 1, 0
        %v304 = vsel %vm288, 1, 0
        %v305 = vsel %vm289, 1, 0
        %v306 = vsel %vm290, 1, 0
        %v307 = vsel %vm291, 1, 0
        %v308 = vsel %vm292, 1, 0
        %v309 = vsel %vm293, 1, 0
        %v310 = vsel %vm294, 1, 0
        %v311 = vsel %vm295, 1, 0
        %v312 = vsel %vm296, 1, 0
        %v313 = vsel %vm297, 1, 0
        %v314 = vsel %vm298, 1, 0
        %v315 = vcvt.s32.f32 %v299
        %v316 = vcvt.s32.f32 %v300
        %v317 = vcvt.s32.f32 %v301
        %v318 = vcvt.s32.f32 %v302
        %v319 = vcvt.s32.f32 %v303
        %v320 = vcvt.s32.f32 %v304
        %v321 = vcvt.s32.f32 %v305
        %v322 = vcvt.s32.f32 %v306
        %v323 = vcvt.s32.f32 %v307
        %v324 = vcvt.s32.f32 %v308
        %v325 = vcvt.s32.f32 %v309
        %v326 = vcvt.s32.f32 %v310
        %v327 = vcvt.s32.f32 %v311
        %v328 = vcvt.s32.f32 %v312
        %v329 = vcvt.s32.f32 %v313
        %v330 = vcvt.s32.f32 %v314
        %vm331 = vcmp.eq.s32.totalorder %v299, 1
        %vm332 = vcmp.eq.s32.totalorder %v300, 1
        %vm333 = vcmp.eq.s32.totalorder %v301, 1
        %vm334 = vcmp.eq.s32.totalorder %v302, 1
        %vm335 = vcmp.eq.s32.totalorder %v303, 1
        %vm336 = vcmp.eq.s32.totalorder %v304, 1
        %vm337 = vcmp.eq.s32.totalorder %v305, 1
        %vm338 = vcmp.eq.s32.totalorder %v306, 1
        %vm339 = vcmp.eq.s32.totalorder %v307, 1
        %vm340 = vcmp.eq.s32.totalorder %v308, 1
        %vm341 = vcmp.eq.s32.totalorder %v309, 1
        %vm342 = vcmp.eq.s32.totalorder %v310, 1
        %vm343 = vcmp.eq.s32.totalorder %v311, 1
        %vm344 = vcmp.eq.s32.totalorder %v312, 1
        %vm345 = vcmp.eq.s32.totalorder %v313, 1
        %vm346 = vcmp.eq.s32.totalorder %v314, 1
        %355 = vst [vmem:[#allocation1] ss:$2 sm:$0xff] %v238
        %s356 = scalar_lea.vmem [#allocation1], 16
        %357 = vst [vmem:[%s356] ss:$2 sm:$0xff] %v239
        %s358 = scalar_lea.vmem [#allocation1], 32
        %359 = vst [vmem:[%s358] ss:$2 sm:$0xff] %v240
        %s360 = scalar_lea.vmem [#allocation1], 48
        %361 = vst [vmem:[%s360] ss:$2 sm:$0xff] %v241
        %v362 = vld.sshfl [vmem:[#allocation1] sm:$0xff pattern:$0x75316420]
        %v363 = vld.sshfl [vmem:[#allocation1 + $0x8] sm:$0xff pattern:$0x75316420]
        %v364 = vld.sshfl [vmem:[#allocation1 + $0x10] sm:$0xff pattern:$0x75316420]
        %v365 = vld.sshfl [vmem:[#allocation1 + $0x18] sm:$0xff pattern:$0x75316420]
        %v366 = vld.sshfl [vmem:[#allocation1 + $0x20] sm:$0xff pattern:$0x75316420]
        %v367 = vld.sshfl [vmem:[#allocation1 + $0x28] sm:$0xff pattern:$0x75316420]
        %v368 = vld.sshfl [vmem:[#allocation1 + $0x30] sm:$0xff pattern:$0x75316420]
        %v369 = vld.sshfl [vmem:[#allocation1 + $0x38] sm:$0xff pattern:$0x75316420]
        %370 = vst [vmem:[#allocation1] ss:$2 sm:$0xff] %v242
        %371 = vst [vmem:[%s356] ss:$2 sm:$0xff] %v243
        %372 = vst [vmem:[%s358] ss:$2 sm:$0xff] %v244
        %373 = vst [vmem:[%s360] ss:$2 sm:$0xff] %v245
        %v374 = vld.sshfl [vmem:[#allocation1] sm:$0xff pattern:$0x75316420]
        %v375 = vld.sshfl [vmem:[#allocation1 + $0x8] sm:$0xff pattern:$0x75316420]
        %v376 = vld.sshfl [vmem:[#allocation1 + $0x10] sm:$0xff pattern:$0x75316420]
        %v377 = vld.sshfl [vmem:[#allocation1 + $0x18] sm:$0xff pattern:$0x75316420]
        %v378 = vld.sshfl [vmem:[#allocation1 + $0x20] sm:$0xff pattern:$0x75316420]
        %v379 = vld.sshfl [vmem:[#allocation1 + $0x28] sm:$0xff pattern:$0x75316420]
        %v380 = vld.sshfl [vmem:[#allocation1 + $0x30] sm:$0xff pattern:$0x75316420]
        %v381 = vld.sshfl [vmem:[#allocation1 + $0x38] sm:$0xff pattern:$0x75316420]
        %v398 = vsel %vm331, %v362, 0.0
        %v399 = vsel %vm332, %v363, 0.0
        %v400 = vsel %vm333, %v364, 0.0
        %v401 = vsel %vm334, %v365, 0.0
        %v402 = vsel %vm335, %v366, 0.0
        %v403 = vsel %vm336, %v367, 0.0
        %v404 = vsel %vm337, %v368, 0.0
        %v405 = vsel %vm338, %v369, 0.0
        %v406 = vsel %vm339, %v374, 0.0
        %v407 = vsel %vm340, %v375, 0.0
        %v408 = vsel %vm341, %v376, 0.0
        %v409 = vsel %vm342, %v377, 0.0
        %v410 = vsel %vm343, %v378, 0.0
        %v411 = vsel %vm344, %v379, 0.0
        %v412 = vsel %vm345, %v380, 0.0
        %v413 = vsel %vm346, %v381, 0.0
        %vm414 = vcmask 1042432
        %v415 = vsel %vm414, %v398, -inf
        %v416 = vrot.slane %v415, 4
        %v417 = vmax.f32 %v415, %v416
        %v418 = vrot.slane %v417, 2
        %v419 = vmax.f32 %v417, %v418
        %v420 = vrot.slane %v419, 1
        %v421 = vmax.f32 %v419, %v420
        %v422 = vsel %vm414, %v399, -inf
        %v423 = vrot.slane %v422, 4
        %v424 = vmax.f32 %v422, %v423
        %v425 = vrot.slane %v424, 2
        %v426 = vmax.f32 %v424, %v425
        %v427 = vrot.slane %v426, 1
        %v428 = vmax.f32 %v426, %v427
        %v429 = vsel %vm414, %v400, -inf
        %v430 = vrot.slane %v429, 4
        %v431 = vmax.f32 %v429, %v430
        %v432 = vrot.slane %v431, 2
        %v433 = vmax.f32 %v431, %v432
        %v434 = vrot.slane %v433, 1
        %v435 = vmax.f32 %v433, %v434
        %v436 = vsel %vm414, %v401, -inf
        %v437 = vrot.slane %v436, 4
        %v438 = vmax.f32 %v436, %v437
        %v439 = vrot.slane %v438, 2
        %v440 = vmax.f32 %v438, %v439
        %v441 = vrot.slane %v440, 1
        %v442 = vmax.f32 %v440, %v441
        %v443 = vsel %vm414, %v402, -inf
        %v444 = vrot.slane %v443, 4
        %v445 = vmax.f32 %v443, %v444
        %v446 = vrot.slane %v445, 2
        %v447 = vmax.f32 %v445, %v446
        %v448 = vrot.slane %v447, 1
        %v449 = vmax.f32 %v447, %v448
        %v450 = vsel %vm414, %v403, -inf
        %v451 = vrot.slane %v450, 4
        %v452 = vmax.f32 %v450, %v451
        %v453 = vrot.slane %v452, 2
        %v454 = vmax.f32 %v452, %v453
        %v455 = vrot.slane %v454, 1
        %v456 = vmax.f32 %v454, %v455
        %v457 = vsel %vm414, %v404, -inf
        %v458 = vrot.slane %v457, 4
        %v459 = vmax.f32 %v457, %v458
        %v460 = vrot.slane %v459, 2
        %v461 = vmax.f32 %v459, %v460
        %v462 = vrot.slane %v461, 1
        %v463 = vmax.f32 %v461, %v462
        %v464 = vsel %vm414, %v405, -inf
        %v465 = vrot.slane %v464, 4
        %v466 = vmax.f32 %v464, %v465
        %v467 = vrot.slane %v466, 2
        %v468 = vmax.f32 %v466, %v467
        %v469 = vrot.slane %v468, 1
        %v470 = vmax.f32 %v468, %v469
        %v471 = vsel %vm414, %v406, -inf
        %v472 = vrot.slane %v471, 4
        %v473 = vmax.f32 %v471, %v472
        %v474 = vrot.slane %v473, 2
        %v475 = vmax.f32 %v473, %v474
        %v476 = vrot.slane %v475, 1
        %v477 = vmax.f32 %v475, %v476
        %v478 = vsel %vm414, %v407, -inf
        %v479 = vrot.slane %v478, 4
        %v480 = vmax.f32 %v478, %v479
        %v481 = vrot.slane %v480, 2
        %v482 = vmax.f32 %v480, %v481
        %v483 = vrot.slane %v482, 1
        %v484 = vmax.f32 %v482, %v483
        %v485 = vsel %vm414, %v408, -inf
        %v486 = vrot.slane %v485, 4
        %v487 = vmax.f32 %v485, %v486
        %v488 = vrot.slane %v487, 2
        %v489 = vmax.f32 %v487, %v488
        %v490 = vrot.slane %v489, 1
        %v491 = vmax.f32 %v489, %v490
        %v492 = vsel %vm414, %v409, -inf
        %v493 = vrot.slane %v492, 4
        %v494 = vmax.f32 %v492, %v493
        %v495 = vrot.slane %v494, 2
        %v496 = vmax.f32 %v494, %v495
        %v497 = vrot.slane %v496, 1
        %v498 = vmax.f32 %v496, %v497
        %v499 = vsel %vm414, %v410, -inf
        %v500 = vrot.slane %v499, 4
        %v501 = vmax.f32 %v499, %v500
        %v502 = vrot.slane %v501, 2
        %v503 = vmax.f32 %v501, %v502
        %v504 = vrot.slane %v503, 1
        %v505 = vmax.f32 %v503, %v504
        %v506 = vsel %vm414, %v411, -inf
        %v507 = vrot.slane %v506, 4
        %v508 = vmax.f32 %v506, %v507
        %v509 = vrot.slane %v508, 2
        %v510 = vmax.f32 %v508, %v509
        %v511 = vrot.slane %v510, 1
        %v512 = vmax.f32 %v510, %v511
        %v513 = vsel %vm414, %v412, -inf
        %v514 = vrot.slane %v513, 4
        %v515 = vmax.f32 %v513, %v514
        %v516 = vrot.slane %v515, 2
        %v517 = vmax.f32 %v515, %v516
        %v518 = vrot.slane %v517, 1
        %v519 = vmax.f32 %v517, %v518
        %v520 = vsel %vm414, %v413, -inf
        %v521 = vrot.slane %v520, 4
        %v522 = vmax.f32 %v520, %v521
        %v523 = vrot.slane %v522, 2
        %v524 = vmax.f32 %v522, %v523
        %v525 = vrot.slane %v524, 1
        %v526 = vmax.f32 %v524, %v525
        %v527 = vsub.f32 %v398, %v421
        %v528 = vsub.f32 %v399, %v428
        %v529 = vsub.f32 %v400, %v435
        %v530 = vsub.f32 %v401, %v442
        %v531 = vsub.f32 %v402, %v449
        %v532 = vsub.f32 %v403, %v456
        %v533 = vsub.f32 %v404, %v463
        %v534 = vsub.f32 %v405, %v470
        %v535 = vsub.f32 %v406, %v477
        %v536 = vsub.f32 %v407, %v484
        %v537 = vsub.f32 %v408, %v491
        %v538 = vsub.f32 %v409, %v498
        %v539 = vsub.f32 %v410, %v505
        %v540 = vsub.f32 %v411, %v512
        %v541 = vsub.f32 %v412, %v519
        %v542 = vsub.f32 %v413, %v526
        %v543 = vmul.f32 %v527, 1.442695
        %v544 = vpow.pop %v543
        %v545 = vmul.f32 %v528, 1.442695
        %v546 = vpow.pop %v545
        %v547 = vmul.f32 %v529, 1.442695
        %v548 = vpow.pop %v547
        %v549 = vmul.f32 %v530, 1.442695
        %v550 = vpow.pop %v549
        %v551 = vmul.f32 %v531, 1.442695
        %v552 = vpow.pop %v551
        %v553 = vmul.f32 %v532, 1.442695
        %v554 = vpow.pop %v553
        %v555 = vmul.f32 %v533, 1.442695
        %v556 = vpow.pop %v555
        %v557 = vmul.f32 %v534, 1.442695
        %v558 = vpow.pop %v557
        %v559 = vmul.f32 %v535, 1.442695
        %v560 = vpow.pop %v559
        %v561 = vmul.f32 %v536, 1.442695
        %v562 = vpow.pop %v561
        %v563 = vmul.f32 %v537, 1.442695
        %v564 = vpow.pop %v563
        %v565 = vmul.f32 %v538, 1.442695
        %v566 = vpow.pop %v565
        %v567 = vmul.f32 %v539, 1.442695
        %v568 = vpow.pop %v567
        %v569 = vmul.f32 %v540, 1.442695
        %v570 = vpow.pop %v569
        %v571 = vmul.f32 %v541, 1.442695
        %v572 = vpow.pop %v571
        %v573 = vmul.f32 %v542, 1.442695
        %v574 = vpow.pop %v573
        %v575 = vsel %vm414, %v544, 0.0
        %v576 = vrot.slane %v575, 4
        %v577 = vadd.f32 %v575, %v576
        %v578 = vrot.slane %v577, 2
        %v579 = vadd.f32 %v577, %v578
        %v580 = vrot.slane %v579, 1
        %v581 = vadd.f32 %v579, %v580
        %v582 = vsel %vm414, %v546, 0.0
        %v583 = vrot.slane %v582, 4
        %v584 = vadd.f32 %v582, %v583
        %v585 = vrot.slane %v584, 2
        %v586 = vadd.f32 %v584, %v585
        %v587 = vrot.slane %v586, 1
        %v588 = vadd.f32 %v586, %v587
        %v589 = vsel %vm414, %v548, 0.0
        %v590 = vrot.slane %v589, 4
        %v591 = vadd.f32 %v589, %v590
        %v592 = vrot.slane %v591, 2
        %v593 = vadd.f32 %v591, %v592
        %v594 = vrot.slane %v593, 1
        %v595 = vadd.f32 %v593, %v594
        %v596 = vsel %vm414, %v550, 0.0
        %v597 = vrot.slane %v596, 4
        %v598 = vadd.f32 %v596, %v597
        %v599 = vrot.slane %v598, 2
        %v600 = vadd.f32 %v598, %v599
        %v601 = vrot.slane %v600, 1
        %v602 = vadd.f32 %v600, %v601
        %v603 = vsel %vm414, %v552, 0.0
        %v604 = vrot.slane %v603, 4
        %v605 = vadd.f32 %v603, %v604
        %v606 = vrot.slane %v605, 2
        %v607 = vadd.f32 %v605, %v606
        %v608 = vrot.slane %v607, 1
        %v609 = vadd.f32 %v607, %v608
        %v610 = vsel %vm414, %v554, 0.0
        %v611 = vrot.slane %v610, 4
        %v612 = vadd.f32 %v610, %v611
        %v613 = vrot.slane %v612, 2
        %v614 = vadd.f32 %v612, %v613
        %v615 = vrot.slane %v614, 1
        %v616 = vadd.f32 %v614, %v615
        %v617 = vsel %vm414, %v556, 0.0
        %v618 = vrot.slane %v617, 4
        %v619 = vadd.f32 %v617, %v618
        %v620 = vrot.slane %v619, 2
        %v621 = vadd.f32 %v619, %v620
        %v622 = vrot.slane %v621, 1
        %v623 = vadd.f32 %v621, %v622
        %v624 = vsel %vm414, %v558, 0.0
        %v625 = vrot.slane %v624, 4
        %v626 = vadd.f32 %v624, %v625
        %v627 = vrot.slane %v626, 2
        %v628 = vadd.f32 %v626, %v627
        %v629 = vrot.slane %v628, 1
        %v630 = vadd.f32 %v628, %v629
        %v631 = vsel %vm414, %v560, 0.0
        %v632 = vrot.slane %v631, 4
        %v633 = vadd.f32 %v631, %v632
        %v634 = vrot.slane %v633, 2
        %v635 = vadd.f32 %v633, %v634
        %v636 = vrot.slane %v635, 1
        %v637 = vadd.f32 %v635, %v636
        %v638 = vsel %vm414, %v562, 0.0
        %v639 = vrot.slane %v638, 4
        %v640 = vadd.f32 %v638, %v639
        %v641 = vrot.slane %v640, 2
        %v642 = vadd.f32 %v640, %v641
        %v643 = vrot.slane %v642, 1
        %v644 = vadd.f32 %v642, %v643
        %v645 = vsel %vm414, %v564, 0.0
        %v646 = vrot.slane %v645, 4
        %v647 = vadd.f32 %v645, %v646
        %v648 = vrot.slane %v647, 2
        %v649 = vadd.f32 %v647, %v648
        %v650 = vrot.slane %v649, 1
        %v651 = vadd.f32 %v649, %v650
        %v652 = vsel %vm414, %v566, 0.0
        %v653 = vrot.slane %v652, 4
        %v654 = vadd.f32 %v652, %v653
        %v655 = vrot.slane %v654, 2
        %v656 = vadd.f32 %v654, %v655
        %v657 = vrot.slane %v656, 1
        %v658 = vadd.f32 %v656, %v657
        %v659 = vsel %vm414, %v568, 0.0
        %v660 = vrot.slane %v659, 4
        %v661 = vadd.f32 %v659, %v660
        %v662 = vrot.slane %v661, 2
        %v663 = vadd.f32 %v661, %v662
        %v664 = vrot.slane %v663, 1
        %v665 = vadd.f32 %v663, %v664
        %v666 = vsel %vm414, %v570, 0.0
        %v667 = vrot.slane %v666, 4
        %v668 = vadd.f32 %v666, %v667
        %v669 = vrot.slane %v668, 2
        %v670 = vadd.f32 %v668, %v669
        %v671 = vrot.slane %v670, 1
        %v672 = vadd.f32 %v670, %v671
        %v673 = vsel %vm414, %v572, 0.0
        %v674 = vrot.slane %v673, 4
        %v675 = vadd.f32 %v673, %v674
        %v676 = vrot.slane %v675, 2
        %v677 = vadd.f32 %v675, %v676
        %v678 = vrot.slane %v677, 1
        %v679 = vadd.f32 %v677, %v678
        %v680 = vsel %vm414, %v574, 0.0
        %v681 = vrot.slane %v680, 4
        %v682 = vadd.f32 %v680, %v681
        %v683 = vrot.slane %v682, 2
        %v684 = vadd.f32 %v682, %v683
        %v685 = vrot.slane %v684, 1
        %v686 = vadd.f32 %v684, %v685
        %v687 = vrcp.pop %v581
        %v688 = vmul.f32 %v581, %v687
        %v689 = vsub.f32 1.0, %v688
        %v690 = vmul.f32 %v687, %v689
        %v691 = vadd.f32 %v687, %v690
        %vm692 = vweird.f32 %v581
        %vm693 = vweird.f32 %v687
        %vm694 = vmor %vm692, %vm693
        %v695 = vsel %vm694, %v687, %v691
        %v696 = vand.u32 2147483647, %v581
        %vm697 = vcmp.eq.f32.partialorder %v696, 8.507059e+37
        %v698 = vand.u32 %v581, 2147483648
        %v699 = vor.u32 1.1754944e-38, %v698
        %v700 = vsel %vm697, %v699, %v695
        %v701 = vmul.f32 1.0, %v700
        %v702 = vrcp.pop %v588
        %v703 = vmul.f32 %v588, %v702
        %v704 = vsub.f32 1.0, %v703
        %v705 = vmul.f32 %v702, %v704
        %v706 = vadd.f32 %v702, %v705
        %vm707 = vweird.f32 %v588
        %vm708 = vweird.f32 %v702
        %vm709 = vmor %vm707, %vm708
        %v710 = vsel %vm709, %v702, %v706
        %v711 = vand.u32 2147483647, %v588
        %vm712 = vcmp.eq.f32.partialorder %v711, 8.507059e+37
        %v713 = vand.u32 %v588, 2147483648
        %v714 = vor.u32 1.1754944e-38, %v713
        %v715 = vsel %vm712, %v714, %v710
        %v716 = vmul.f32 1.0, %v715
        %v717 = vrcp.pop %v595
        %v718 = vmul.f32 %v595, %v717
        %v719 = vsub.f32 1.0, %v718
        %v720 = vmul.f32 %v717, %v719
        %v721 = vadd.f32 %v717, %v720
        %vm722 = vweird.f32 %v595
        %vm723 = vweird.f32 %v717
        %vm724 = vmor %vm722, %vm723
        %v725 = vsel %vm724, %v717, %v721
        %v726 = vand.u32 2147483647, %v595
        %vm727 = vcmp.eq.f32.partialorder %v726, 8.507059e+37
        %v728 = vand.u32 %v595, 2147483648
        %v729 = vor.u32 1.1754944e-38, %v728
        %v730 = vsel %vm727, %v729, %v725
        %v731 = vmul.f32 1.0, %v730
        %v732 = vrcp.pop %v602
        %v733 = vmul.f32 %v602, %v732
        %v734 = vsub.f32 1.0, %v733
        %v735 = vmul.f32 %v732, %v734
        %v736 = vadd.f32 %v732, %v735
        %vm737 = vweird.f32 %v602
        %vm738 = vweird.f32 %v732
        %vm739 = vmor %vm737, %vm738
        %v740 = vsel %vm739, %v732, %v736
        %v741 = vand.u32 2147483647, %v602
        %vm742 = vcmp.eq.f32.partialorder %v741, 8.507059e+37
        %v743 = vand.u32 %v602, 2147483648
        %v744 = vor.u32 1.1754944e-38, %v743
        %v745 = vsel %vm742, %v744, %v740
        %v746 = vmul.f32 1.0, %v745
        %v747 = vrcp.pop %v609
        %v748 = vmul.f32 %v609, %v747
        %v749 = vsub.f32 1.0, %v748
        %v750 = vmul.f32 %v747, %v749
        %v751 = vadd.f32 %v747, %v750
        %vm752 = vweird.f32 %v609
        %vm753 = vweird.f32 %v747
        %vm754 = vmor %vm752, %vm753
        %v755 = vsel %vm754, %v747, %v751
        %v756 = vand.u32 2147483647, %v609
        %vm757 = vcmp.eq.f32.partialorder %v756, 8.507059e+37
        %v758 = vand.u32 %v609, 2147483648
        %v759 = vor.u32 1.1754944e-38, %v758
        %v760 = vsel %vm757, %v759, %v755
        %v761 = vmul.f32 1.0, %v760
        %v762 = vrcp.pop %v616
        %v763 = vmul.f32 %v616, %v762
        %v764 = vsub.f32 1.0, %v763
        %v765 = vmul.f32 %v762, %v764
        %v766 = vadd.f32 %v762, %v765
        %vm767 = vweird.f32 %v616
        %vm768 = vweird.f32 %v762
        %vm769 = vmor %vm767, %vm768
        %v770 = vsel %vm769, %v762, %v766
        %v771 = vand.u32 2147483647, %v616
        %vm772 = vcmp.eq.f32.partialorder %v771, 8.507059e+37
        %v773 = vand.u32 %v616, 2147483648
        %v774 = vor.u32 1.1754944e-38, %v773
        %v775 = vsel %vm772, %v774, %v770
        %v776 = vmul.f32 1.0, %v775
        %v777 = vrcp.pop %v623
        %v778 = vmul.f32 %v623, %v777
        %v779 = vsub.f32 1.0, %v778
        %v780 = vmul.f32 %v777, %v779
        %v781 = vadd.f32 %v777, %v780
        %vm782 = vweird.f32 %v623
        %vm783 = vweird.f32 %v777
        %vm784 = vmor %vm782, %vm783
        %v785 = vsel %vm784, %v777, %v781
        %v786 = vand.u32 2147483647, %v623
        %vm787 = vcmp.eq.f32.partialorder %v786, 8.507059e+37
        %v788 = vand.u32 %v623, 2147483648
        %v789 = vor.u32 1.1754944e-38, %v788
        %v790 = vsel %vm787, %v789, %v785
        %v791 = vmul.f32 1.0, %v790
        %v792 = vrcp.pop %v630
        %v793 = vmul.f32 %v630, %v792
        %v794 = vsub.f32 1.0, %v793
        %v795 = vmul.f32 %v792, %v794
        %v796 = vadd.f32 %v792, %v795
        %vm797 = vweird.f32 %v630
        %vm798 = vweird.f32 %v792
        %vm799 = vmor %vm797, %vm798
        %v800 = vsel %vm799, %v792, %v796
        %v801 = vand.u32 2147483647, %v630
        %vm802 = vcmp.eq.f32.partialorder %v801, 8.507059e+37
        %v803 = vand.u32 %v630, 2147483648
        %v804 = vor.u32 1.1754944e-38, %v803
        %v805 = vsel %vm802, %v804, %v800
        %v806 = vmul.f32 1.0, %v805
        %v807 = vrcp.pop %v637
        %v808 = vmul.f32 %v637, %v807
        %v809 = vsub.f32 1.0, %v808
        %v810 = vmul.f32 %v807, %v809
        %v811 = vadd.f32 %v807, %v810
        %vm812 = vweird.f32 %v637
        %vm813 = vweird.f32 %v807
        %vm814 = vmor %vm812, %vm813
        %v815 = vsel %vm814, %v807, %v811
        %v816 = vand.u32 2147483647, %v637
        %vm817 = vcmp.eq.f32.partialorder %v816, 8.507059e+37
        %v818 = vand.u32 %v637, 2147483648
        %v819 = vor.u32 1.1754944e-38, %v818
        %v820 = vsel %vm817, %v819, %v815
        %v821 = vmul.f32 1.0, %v820
        %v822 = vrcp.pop %v644
        %v823 = vmul.f32 %v644, %v822
        %v824 = vsub.f32 1.0, %v823
        %v825 = vmul.f32 %v822, %v824
        %v826 = vadd.f32 %v822, %v825
        %vm827 = vweird.f32 %v644
        %vm828 = vweird.f32 %v822
        %vm829 = vmor %vm827, %vm828
        %v830 = vsel %vm829, %v822, %v826
        %v831 = vand.u32 2147483647, %v644
        %vm832 = vcmp.eq.f32.partialorder %v831, 8.507059e+37
        %v833 = vand.u32 %v644, 2147483648
        %v834 = vor.u32 1.1754944e-38, %v833
        %v835 = vsel %vm832, %v834, %v830
        %v836 = vmul.f32 1.0, %v835
        %v837 = vrcp.pop %v651
        %v838 = vmul.f32 %v651, %v837
        %v839 = vsub.f32 1.0, %v838
        %v840 = vmul.f32 %v837, %v839
        %v841 = vadd.f32 %v837, %v840
        %vm842 = vweird.f32 %v651
        %vm843 = vweird.f32 %v837
        %vm844 = vmor %vm842, %vm843
        %v845 = vsel %vm844, %v837, %v841
        %v846 = vand.u32 2147483647, %v651
        %vm847 = vcmp.eq.f32.partialorder %v846, 8.507059e+37
        %v848 = vand.u32 %v651, 2147483648
        %v849 = vor.u32 1.1754944e-38, %v848
        %v850 = vsel %vm847, %v849, %v845
        %v851 = vmul.f32 1.0, %v850
        %v852 = vrcp.pop %v658
        %v853 = vmul.f32 %v658, %v852
        %v854 = vsub.f32 1.0, %v853
        %v855 = vmul.f32 %v852, %v854
        %v856 = vadd.f32 %v852, %v855
        %vm857 = vweird.f32 %v658
        %vm858 = vweird.f32 %v852
        %vm859 = vmor %vm857, %vm858
        %v860 = vsel %vm859, %v852, %v856
        %v861 = vand.u32 2147483647, %v658
        %vm862 = vcmp.eq.f32.partialorder %v861, 8.507059e+37
        %v863 = vand.u32 %v658, 2147483648
        %v864 = vor.u32 1.1754944e-38, %v863
        %v865 = vsel %vm862, %v864, %v860
        %v866 = vmul.f32 1.0, %v865
        %v867 = vrcp.pop %v665
        %v868 = vmul.f32 %v665, %v867
        %v869 = vsub.f32 1.0, %v868
        %v870 = vmul.f32 %v867, %v869
        %v871 = vadd.f32 %v867, %v870
        %vm872 = vweird.f32 %v665
        %vm873 = vweird.f32 %v867
        %vm874 = vmor %vm872, %vm873
        %v875 = vsel %vm874, %v867, %v871
        %v876 = vand.u32 2147483647, %v665
        %vm877 = vcmp.eq.f32.partialorder %v876, 8.507059e+37
        %v878 = vand.u32 %v665, 2147483648
        %v879 = vor.u32 1.1754944e-38, %v878
        %v880 = vsel %vm877, %v879, %v875
        %v881 = vmul.f32 1.0, %v880
        %v882 = vrcp.pop %v672
        %v883 = vmul.f32 %v672, %v882
        %v884 = vsub.f32 1.0, %v883
        %v885 = vmul.f32 %v882, %v884
        %v886 = vadd.f32 %v882, %v885
        %vm887 = vweird.f32 %v672
        %vm888 = vweird.f32 %v882
        %vm889 = vmor %vm887, %vm888
        %v890 = vsel %vm889, %v882, %v886
        %v891 = vand.u32 2147483647, %v672
        %vm892 = vcmp.eq.f32.partialorder %v891, 8.507059e+37
        %v893 = vand.u32 %v672, 2147483648
        %v894 = vor.u32 1.1754944e-38, %v893
        %v895 = vsel %vm892, %v894, %v890
        %v896 = vmul.f32 1.0, %v895
        %v897 = vrcp.pop %v679
        %v898 = vmul.f32 %v679, %v897
        %v899 = vsub.f32 1.0, %v898
        %v900 = vmul.f32 %v897, %v899
        %v901 = vadd.f32 %v897, %v900
        %vm902 = vweird.f32 %v679
        %vm903 = vweird.f32 %v897
        %vm904 = vmor %vm902, %vm903
        %v905 = vsel %vm904, %v897, %v901
        %v906 = vand.u32 2147483647, %v679
        %vm907 = vcmp.eq.f32.partialorder %v906, 8.507059e+37
        %v908 = vand.u32 %v679, 2147483648
        %v909 = vor.u32 1.1754944e-38, %v908
        %v910 = vsel %vm907, %v909, %v905
        %v911 = vmul.f32 1.0, %v910
        %v912 = vrcp.pop %v686
        %v913 = vmul.f32 %v686, %v912
        %v914 = vsub.f32 1.0, %v913
        %v915 = vmul.f32 %v912, %v914
        %v916 = vadd.f32 %v912, %v915
        %vm917 = vweird.f32 %v686
        %vm918 = vweird.f32 %v912
        %vm919 = vmor %vm917, %vm918
        %v920 = vsel %vm919, %v912, %v916
        %v921 = vand.u32 2147483647, %v686
        %vm922 = vcmp.eq.f32.partialorder %v921, 8.507059e+37
        %v923 = vand.u32 %v686, 2147483648
        %v924 = vor.u32 1.1754944e-38, %v923
        %v925 = vsel %vm922, %v924, %v920
        %v926 = vmul.f32 1.0, %v925
        %v927 = vmul.f32 %v544, %v701
        %v928 = vmul.f32 %v546, %v716
        %v929 = vmul.f32 %v548, %v731
        %v930 = vmul.f32 %v550, %v746
        %v931 = vmul.f32 %v552, %v761
        %v932 = vmul.f32 %v554, %v776
        %v933 = vmul.f32 %v556, %v791
        %v934 = vmul.f32 %v558, %v806
        %v935 = vmul.f32 %v560, %v821
        %v936 = vmul.f32 %v562, %v836
        %v937 = vmul.f32 %v564, %v851
        %v938 = vmul.f32 %v566, %v866
        %v939 = vmul.f32 %v568, %v881
        %v940 = vmul.f32 %v570, %v896
        %v941 = vmul.f32 %v572, %v911
        %v942 = vmul.f32 %v574, %v926
        %v943 = vmul.f32 %v927, %v315
        %v944 = vmul.f32 %v928, %v316
        %v945 = vmul.f32 %v929, %v317
        %v946 = vmul.f32 %v930, %v318
        %v947 = vmul.f32 %v931, %v319
        %v948 = vmul.f32 %v932, %v320
        %v949 = vmul.f32 %v933, %v321
        %v950 = vmul.f32 %v934, %v322
        %v951 = vmul.f32 %v935, %v323
        %v952 = vmul.f32 %v936, %v324
        %v953 = vmul.f32 %v937, %v325
        %v954 = vmul.f32 %v938, %v326
        %v955 = vmul.f32 %v939, %v327
        %v956 = vmul.f32 %v940, %v328
        %v957 = vmul.f32 %v941, %v329
        %v958 = vmul.f32 %v942, %v330
        %v959 = vlaneseq
        %v960 = vshrl.u32 %v959, 7
        %v961 = vperm.slane %v246, 0
        %v962 = vperm.slane %v246, 1
        %v963 = vperm.slane %v246, 2
        %v964 = vperm.slane %v246, 3
        %v965 = vperm.slane %v246, 4
        %v966 = vperm.slane %v246, 5
        %v967 = vperm.slane %v246, 6
        %v968 = vperm.slane %v246, 7
        %v969 = vperm.slane %v247, 0
        %v970 = vperm.slane %v247, 1
        %v971 = vperm.slane %v247, 2
        %v972 = vperm.slane %v247, 3
        %v973 = vperm.slane %v247, 4
        %v974 = vperm.slane %v247, 5
        %v975 = vperm.slane %v247, 6
        %v976 = vperm.slane %v247, 7
        %vm977 = vcmp.eq.s32.totalorder %v960, %v961
        %vm978 = vcmp.eq.s32.totalorder %v960, %v962
        %vm979 = vcmp.eq.s32.totalorder %v960, %v963
        %vm980 = vcmp.eq.s32.totalorder %v960, %v964
        %vm981 = vcmp.eq.s32.totalorder %v960, %v965
        %vm982 = vcmp.eq.s32.totalorder %v960, %v966
        %vm983 = vcmp.eq.s32.totalorder %v960, %v967
        %vm984 = vcmp.eq.s32.totalorder %v960, %v968
        %vm985 = vcmp.eq.s32.totalorder %v960, %v969
        %vm986 = vcmp.eq.s32.totalorder %v960, %v970
        %vm987 = vcmp.eq.s32.totalorder %v960, %v971
        %vm988 = vcmp.eq.s32.totalorder %v960, %v972
        %vm989 = vcmp.eq.s32.totalorder %v960, %v973
        %vm990 = vcmp.eq.s32.totalorder %v960, %v974
        %vm991 = vcmp.eq.s32.totalorder %v960, %v975
        %vm992 = vcmp.eq.s32.totalorder %v960, %v976
        %v993 = vsel %vm977, 1, 0
        %v994 = vsel %vm978, 1, 0
        %v995 = vsel %vm979, 1, 0
        %v996 = vsel %vm980, 1, 0
        %v997 = vsel %vm981, 1, 0
        %v998 = vsel %vm982, 1, 0
        %v999 = vsel %vm983, 1, 0
        %v1000 = vsel %vm984, 1, 0
        %v1001 = vsel %vm985, 1, 0
        %v1002 = vsel %vm986, 1, 0
        %v1003 = vsel %vm987, 1, 0
        %v1004 = vsel %vm988, 1, 0
        %v1005 = vsel %vm989, 1, 0
        %v1006 = vsel %vm990, 1, 0
        %v1007 = vsel %vm991, 1, 0
        %v1008 = vsel %vm992, 1, 0
        %v1009 = vcvt.s32.f32 %v993
        %v1010 = vcvt.s32.f32 %v994
        %v1011 = vcvt.s32.f32 %v995
        %v1012 = vcvt.s32.f32 %v996
        %v1013 = vcvt.s32.f32 %v997
        %v1014 = vcvt.s32.f32 %v998
        %v1015 = vcvt.s32.f32 %v999
        %v1016 = vcvt.s32.f32 %v1000
        %v1017 = vcvt.s32.f32 %v1001
        %v1018 = vcvt.s32.f32 %v1002
        %v1019 = vcvt.s32.f32 %v1003
        %v1020 = vcvt.s32.f32 %v1004
        %v1021 = vcvt.s32.f32 %v1005
        %v1022 = vcvt.s32.f32 %v1006
        %v1023 = vcvt.s32.f32 %v1007
        %v1024 = vcvt.s32.f32 %v1008
        %v1025 = vmul.f32 %v1009, %v315
        %v1026 = vmul.f32 %v1010, %v316
        %v1027 = vmul.f32 %v1011, %v317
        %v1028 = vmul.f32 %v1012, %v318
        %v1029 = vmul.f32 %v1013, %v319
        %v1030 = vmul.f32 %v1014, %v320
        %v1031 = vmul.f32 %v1015, %v321
        %v1032 = vmul.f32 %v1016, %v322
        %v1033 = vmul.f32 %v1017, %v323
        %v1034 = vmul.f32 %v1018, %v324
        %v1035 = vmul.f32 %v1019, %v325
        %v1036 = vmul.f32 %v1020, %v326
        %v1037 = vmul.f32 %v1021, %v327
        %v1038 = vmul.f32 %v1022, %v328
        %v1039 = vmul.f32 %v1023, %v329
        %v1040 = vmul.f32 %v1024, %v330
        %v1041 = vld [vmem:[#allocation2] sm:$0x77]
        %v1042 = vld [vmem:[#allocation2 + $0x8] sm:$0x77]
        %v1043 = vld [vmem:[#allocation2 + $0x10] sm:$0x77]
        %v1044 = vld [vmem:[#allocation2 + $0x18] sm:$0x77]
        %v1045 = vld [vmem:[#allocation2 + $0x20] sm:$0x77]
        %v1046 = vld [vmem:[#allocation2 + $0x28] sm:$0x77]
        %v1047 = vld [vmem:[#allocation2 + $0x30] sm:$0x77]
        %v1048 = vld [vmem:[#allocation2 + $0x38] sm:$0x77]
        %v1049 = vmul.f32 %v1025, %v943
        %v1050 = vmul.f32 %v1026, %v944
        %v1051 = vmul.f32 %v1027, %v945
        %v1052 = vmul.f32 %v1028, %v946
        %v1053 = vmul.f32 %v1029, %v947
        %v1054 = vmul.f32 %v1030, %v948
        %v1055 = vmul.f32 %v1031, %v949
        %v1056 = vmul.f32 %v1032, %v950
        %v1057 = vmul.f32 %v1033, %v951
        %v1058 = vmul.f32 %v1034, %v952
        %v1059 = vmul.f32 %v1035, %v953
        %v1060 = vmul.f32 %v1036, %v954
        %v1061 = vmul.f32 %v1037, %v955
        %v1062 = vmul.f32 %v1038, %v956
        %v1063 = vmul.f32 %v1039, %v957
        %v1064 = vmul.f32 %v1040, %v958
        %v1081 = vrot.slane %v1050, 4
        %v1082 = vrot.slane %v1052, 4
        %v1083 = vrot.slane %v1054, 4
        %v1084 = vrot.slane %v1056, 4
        %v1085 = vrot.slane %v1058, 4
        %v1086 = vrot.slane %v1060, 4
        %v1087 = vrot.slane %v1062, 4
        %v1088 = vrot.slane %v1064, 4
        %vm1089 = vcmask 1043456
        %v1090 = vsel %vm1089, %v1049, %v1081
        %v1091 = vsel %vm1089, %v1051, %v1082
        %v1092 = vsel %vm1089, %v1053, %v1083
        %v1093 = vsel %vm1089, %v1055, %v1084
        %v1094 = vsel %vm1089, %v1057, %v1085
        %v1095 = vsel %vm1089, %v1059, %v1086
        %v1096 = vsel %vm1089, %v1061, %v1087
        %v1097 = vsel %vm1089, %v1063, %v1088
        %v1106 = vadd.f32 %v1041, %v1090
        %v1107 = vadd.f32 %v1042, %v1091
        %v1108 = vadd.f32 %v1043, %v1092
        %v1109 = vadd.f32 %v1044, %v1093
        %v1110 = vadd.f32 %v1045, %v1094
        %v1111 = vadd.f32 %v1046, %v1095
        %v1112 = vadd.f32 %v1047, %v1096
        %v1113 = vadd.f32 %v1048, %v1097
        %1114 = vst [vmem:[#allocation2] sm:$0x77] %v1106
        %1115 = vst [vmem:[#allocation2 + $0x8] sm:$0x77] %v1107
        %1116 = vst [vmem:[#allocation2 + $0x10] sm:$0x77] %v1108
        %1117 = vst [vmem:[#allocation2 + $0x18] sm:$0x77] %v1109
        %1118 = vst [vmem:[#allocation2 + $0x20] sm:$0x77] %v1110
        %1119 = vst [vmem:[#allocation2 + $0x28] sm:$0x77] %v1111
        %1120 = vst [vmem:[#allocation2 + $0x30] sm:$0x77] %v1112
        %1121 = vst [vmem:[#allocation2 + $0x38] sm:$0x77] %v1113
        %v1122 = vld [vmem:[#allocation3] sm:$0x77]
        %v1123 = vld [vmem:[#allocation3 + $0x8] sm:$0x77]
        %v1124 = vld [vmem:[#allocation3 + $0x10] sm:$0x77]
        %v1125 = vld [vmem:[#allocation3 + $0x18] sm:$0x77]
        %v1126 = vld [vmem:[#allocation3 + $0x20] sm:$0x77]
        %v1127 = vld [vmem:[#allocation3 + $0x28] sm:$0x77]
        %v1128 = vld [vmem:[#allocation3 + $0x30] sm:$0x77]
        %v1129 = vld [vmem:[#allocation3 + $0x38] sm:$0x77]
        %v1146 = vrot.slane %v944, 4
        %v1147 = vrot.slane %v946, 4
        %v1148 = vrot.slane %v948, 4
        %v1149 = vrot.slane %v950, 4
        %v1150 = vrot.slane %v952, 4
        %v1151 = vrot.slane %v954, 4
        %v1152 = vrot.slane %v956, 4
        %v1153 = vrot.slane %v958, 4
        %v1154 = vsel %vm1089, %v943, %v1146
        %v1155 = vsel %vm1089, %v945, %v1147
        %v1156 = vsel %vm1089, %v947, %v1148
        %v1157 = vsel %vm1089, %v949, %v1149
        %v1158 = vsel %vm1089, %v951, %v1150
        %v1159 = vsel %vm1089, %v953, %v1151
        %v1160 = vsel %vm1089, %v955, %v1152
        %v1161 = vsel %vm1089, %v957, %v1153
        %v1170 = vadd.f32 %v1122, %v1154
        %v1171 = vadd.f32 %v1123, %v1155
        %v1172 = vadd.f32 %v1124, %v1156
        %v1173 = vadd.f32 %v1125, %v1157
        %v1174 = vadd.f32 %v1126, %v1158
        %v1175 = vadd.f32 %v1127, %v1159
        %v1176 = vadd.f32 %v1128, %v1160
        %v1177 = vadd.f32 %v1129, %v1161
        %1178 = vst [vmem:[#allocation3] sm:$0x77] %v1170
        %1179 = vst [vmem:[#allocation3 + $0x8] sm:$0x77] %v1171
        %1180 = vst [vmem:[#allocation3 + $0x10] sm:$0x77] %v1172
        %1181 = vst [vmem:[#allocation3 + $0x18] sm:$0x77] %v1173
        %1182 = vst [vmem:[#allocation3 + $0x20] sm:$0x77] %v1174
        %1183 = vst [vmem:[#allocation3 + $0x28] sm:$0x77] %v1175
        %1184 = vst [vmem:[#allocation3 + $0x30] sm:$0x77] %v1176
        %1185 = vst [vmem:[#allocation3 + $0x38] sm:$0x77] %v1177
        %v1186 = vld [vmem:[#allocation4] sm:$0x77]
        %v1187 = vld [vmem:[#allocation4 + $0x8] sm:$0x77]
        %v1188 = vld [vmem:[#allocation4 + $0x10] sm:$0x77]
        %v1189 = vld [vmem:[#allocation4 + $0x18] sm:$0x77]
        %v1190 = vld [vmem:[#allocation4 + $0x20] sm:$0x77]
        %v1191 = vld [vmem:[#allocation4 + $0x28] sm:$0x77]
        %v1192 = vld [vmem:[#allocation4 + $0x30] sm:$0x77]
        %v1193 = vld [vmem:[#allocation4 + $0x38] sm:$0x77]
        %v1210 = vrot.slane %v1026, 4
        %v1211 = vrot.slane %v1028, 4
        %v1212 = vrot.slane %v1030, 4
        %v1213 = vrot.slane %v1032, 4
        %v1214 = vrot.slane %v1034, 4
        %v1215 = vrot.slane %v1036, 4
        %v1216 = vrot.slane %v1038, 4
        %v1217 = vrot.slane %v1040, 4
        %v1218 = vsel %vm1089, %v1025, %v1210
        %v1219 = vsel %vm1089, %v1027, %v1211
        %v1220 = vsel %vm1089, %v1029, %v1212
        %v1221 = vsel %vm1089, %v1031, %v1213
        %v1222 = vsel %vm1089, %v1033, %v1214
        %v1223 = vsel %vm1089, %v1035, %v1215
        %v1224 = vsel %vm1089, %v1037, %v1216
        %v1225 = vsel %vm1089, %v1039, %v1217
        %v1234 = vadd.f32 %v1186, %v1218
        %v1235 = vadd.f32 %v1187, %v1219
        %v1236 = vadd.f32 %v1188, %v1220
        %v1237 = vadd.f32 %v1189, %v1221
        %v1238 = vadd.f32 %v1190, %v1222
        %v1239 = vadd.f32 %v1191, %v1223
        %v1240 = vadd.f32 %v1192, %v1224
        %v1241 = vadd.f32 %v1193, %v1225
        %1242 = vst [vmem:[#allocation4] sm:$0x77] %v1234
        %1243 = vst [vmem:[#allocation4 + $0x8] sm:$0x77] %v1235
        %1244 = vst [vmem:[#allocation4 + $0x10] sm:$0x77] %v1236
        %1245 = vst [vmem:[#allocation4 + $0x18] sm:$0x77] %v1237
        %1246 = vst [vmem:[#allocation4 + $0x20] sm:$0x77] %v1238
        %1247 = vst [vmem:[#allocation4 + $0x28] sm:$0x77] %v1239
        %1248 = vst [vmem:[#allocation4 + $0x30] sm:$0x77] %v1240
        %1249 = vst [vmem:[#allocation4 + $0x38] sm:$0x77] %v1241
        %p1250 = scmp.eq.s32.totalorder %s20, 2
        // Predicated region
        $region41: #{tpu_custom_call.1} parent=27 // pred_check
          %p1251 = pneg %p1250
        $region42: #{tpu_custom_call.1} parent=27 // pred_check_branch
          %1253 = sbr.rel (%p1251) target = $region44
        $region43: #{tpu_custom_call.1} parent=27 // pred_region
          %v1254 = vld [vmem:[#allocation2] sm:$0x77]
          %v1255 = vld [vmem:[#allocation2 + $0x8] sm:$0x77]
          %v1256 = vld [vmem:[#allocation2 + $0x10] sm:$0x77]
          %v1257 = vld [vmem:[#allocation2 + $0x18] sm:$0x77]
          %v1258 = vld [vmem:[#allocation2 + $0x20] sm:$0x77]
          %v1259 = vld [vmem:[#allocation2 + $0x28] sm:$0x77]
          %v1260 = vld [vmem:[#allocation2 + $0x30] sm:$0x77]
          %v1261 = vld [vmem:[#allocation2 + $0x38] sm:$0x77]
          %1270 = vst [vmem:[#allocation1] ss:$2 sm:$0xff] %v1254
          %s1271 = scalar_lea.vmem [#allocation1], 16
          %1272 = vst [vmem:[%s1271] ss:$2 sm:$0xff] %v1255
          %s1273 = scalar_lea.vmem [#allocation1], 32
          %1274 = vst [vmem:[%s1273] ss:$2 sm:$0xff] %v1256
          %s1275 = scalar_lea.vmem [#allocation1], 48
          %1276 = vst [vmem:[%s1275] ss:$2 sm:$0xff] %v1257
          %v1277 = vld.sshfl [vmem:[#allocation1] sm:$0xff pattern:$0x75316420]
          %v1278 = vld.sshfl [vmem:[#allocation1 + $0x8] sm:$0xff pattern:$0x75316420]
          %v1279 = vld.sshfl [vmem:[#allocation1 + $0x10] sm:$0xff pattern:$0x75316420]
          %v1280 = vld.sshfl [vmem:[#allocation1 + $0x18] sm:$0xff pattern:$0x75316420]
          %v1281 = vld.sshfl [vmem:[#allocation1 + $0x20] sm:$0xff pattern:$0x75316420]
          %v1282 = vld.sshfl [vmem:[#allocation1 + $0x28] sm:$0xff pattern:$0x75316420]
          %v1283 = vld.sshfl [vmem:[#allocation1 + $0x30] sm:$0xff pattern:$0x75316420]
          %v1284 = vld.sshfl [vmem:[#allocation1 + $0x38] sm:$0xff pattern:$0x75316420]
          %1285 = vst [vmem:[#allocation1] ss:$2 sm:$0xff] %v1258
          %1286 = vst [vmem:[%s1271] ss:$2 sm:$0xff] %v1259
          %1287 = vst [vmem:[%s1273] ss:$2 sm:$0xff] %v1260
          %1288 = vst [vmem:[%s1275] ss:$2 sm:$0xff] %v1261
          %v1289 = vld.sshfl [vmem:[#allocation1] sm:$0xff pattern:$0x75316420]
          %v1290 = vld.sshfl [vmem:[#allocation1 + $0x8] sm:$0xff pattern:$0x75316420]
          %v1291 = vld.sshfl [vmem:[#allocation1 + $0x10] sm:$0xff pattern:$0x75316420]
          %v1292 = vld.sshfl [vmem:[#allocation1 + $0x18] sm:$0xff pattern:$0x75316420]
          %v1293 = vld.sshfl [vmem:[#allocation1 + $0x20] sm:$0xff pattern:$0x75316420]
          %v1294 = vld.sshfl [vmem:[#allocation1 + $0x28] sm:$0xff pattern:$0x75316420]
          %v1295 = vld.sshfl [vmem:[#allocation1 + $0x30] sm:$0xff pattern:$0x75316420]
          %v1296 = vld.sshfl [vmem:[#allocation1 + $0x38] sm:$0xff pattern:$0x75316420]
          %v1313 = vsel %vm414, %v1277, 0.0
          %v1314 = vsel %vm414, %v1278, 0.0
          %v1315 = vadd.f32 %v1313, %v1314
          %v1316 = vsel %vm414, %v1279, 0.0
          %v1317 = vadd.f32 %v1315, %v1316
          %v1318 = vsel %vm414, %v1280, 0.0
          %v1319 = vadd.f32 %v1317, %v1318
          %v1320 = vsel %vm414, %v1281, 0.0
          %v1321 = vadd.f32 %v1319, %v1320
          %v1322 = vsel %vm414, %v1282, 0.0
          %v1323 = vadd.f32 %v1321, %v1322
          %v1324 = vsel %vm414, %v1283, 0.0
          %v1325 = vadd.f32 %v1323, %v1324
          %v1326 = vsel %vm414, %v1284, 0.0
          %v1327 = vadd.f32 %v1325, %v1326
          %v1328 = vsel %vm414, %v1289, 0.0
          %v1329 = vadd.f32 %v1327, %v1328
          %v1330 = vsel %vm414, %v1290, 0.0
          %v1331 = vadd.f32 %v1329, %v1330
          %v1332 = vsel %vm414, %v1291, 0.0
          %v1333 = vadd.f32 %v1331, %v1332
          %v1334 = vsel %vm414, %v1292, 0.0
          %v1335 = vadd.f32 %v1333, %v1334
          %v1336 = vsel %vm414, %v1293, 0.0
          %v1337 = vadd.f32 %v1335, %v1336
          %v1338 = vsel %vm414, %v1294, 0.0
          %v1339 = vadd.f32 %v1337, %v1338
          %v1340 = vsel %vm414, %v1295, 0.0
          %v1341 = vadd.f32 %v1339, %v1340
          %v1342 = vsel %vm414, %v1296, 0.0
          %v1343 = vadd.f32 %v1341, %v1342
          %1344 = vadd.xlane.f32.xlu0 %v1343
          %v1345 = vpop.xlane.xlu0 %1344
          %v1346 = vld [vmem:[#allocation3] sm:$0x77]
          %v1347 = vld [vmem:[#allocation3 + $0x8] sm:$0x77]
          %v1348 = vld [vmem:[#allocation3 + $0x10] sm:$0x77]
          %v1349 = vld [vmem:[#allocation3 + $0x18] sm:$0x77]
          %v1350 = vld [vmem:[#allocation3 + $0x20] sm:$0x77]
          %v1351 = vld [vmem:[#allocation3 + $0x28] sm:$0x77]
          %v1352 = vld [vmem:[#allocation3 + $0x30] sm:$0x77]
          %v1353 = vld [vmem:[#allocation3 + $0x38] sm:$0x77]
          %1362 = vst [vmem:[#allocation1] ss:$2 sm:$0xff] %v1346
          %s1363 = scalar_lea.vmem [#allocation1], 16
          %1364 = vst [vmem:[%s1363] ss:$2 sm:$0xff] %v1347
          %s1365 = scalar_lea.vmem [#allocation1], 32
          %1366 = vst [vmem:[%s1365] ss:$2 sm:$0xff] %v1348
          %s1367 = scalar_lea.vmem [#allocation1], 48
          %1368 = vst [vmem:[%s1367] ss:$2 sm:$0xff] %v1349
          %v1369 = vld.sshfl [vmem:[#allocation1] sm:$0xff pattern:$0x75316420]
          %v1370 = vld.sshfl [vmem:[#allocation1 + $0x8] sm:$0xff pattern:$0x75316420]
          %v1371 = vld.sshfl [vmem:[#allocation1 + $0x10] sm:$0xff pattern:$0x75316420]
          %v1372 = vld.sshfl [vmem:[#allocation1 + $0x18] sm:$0xff pattern:$0x75316420]
          %v1373 = vld.sshfl [vmem:[#allocation1 + $0x20] sm:$0xff pattern:$0x75316420]
          %v1374 = vld.sshfl [vmem:[#allocation1 + $0x28] sm:$0xff pattern:$0x75316420]
          %v1375 = vld.sshfl [vmem:[#allocation1 + $0x30] sm:$0xff pattern:$0x75316420]
          %v1376 = vld.sshfl [vmem:[#allocation1 + $0x38] sm:$0xff pattern:$0x75316420]
          %1377 = vst [vmem:[#allocation1] ss:$2 sm:$0xff] %v1350
          %1378 = vst [vmem:[%s1363] ss:$2 sm:$0xff] %v1351
          %1379 = vst [vmem:[%s1365] ss:$2 sm:$0xff] %v1352
          %1380 = vst [vmem:[%s1367] ss:$2 sm:$0xff] %v1353
          %v1381 = vld.sshfl [vmem:[#allocation1] sm:$0xff pattern:$0x75316420]
          %v1382 = vld.sshfl [vmem:[#allocation1 + $0x8] sm:$0xff pattern:$0x75316420]
          %v1383 = vld.sshfl [vmem:[#allocation1 + $0x10] sm:$0xff pattern:$0x75316420]
          %v1384 = vld.sshfl [vmem:[#allocation1 + $0x18] sm:$0xff pattern:$0x75316420]
          %v1385 = vld.sshfl [vmem:[#allocation1 + $0x20] sm:$0xff pattern:$0x75316420]
          %v1386 = vld.sshfl [vmem:[#allocation1 + $0x28] sm:$0xff pattern:$0x75316420]
          %v1387 = vld.sshfl [vmem:[#allocation1 + $0x30] sm:$0xff pattern:$0x75316420]
          %v1388 = vld.sshfl [vmem:[#allocation1 + $0x38] sm:$0xff pattern:$0x75316420]
          %v1405 = vsel %vm414, %v1369, 0.0
          %v1406 = vsel %vm414, %v1370, 0.0
          %v1407 = vadd.f32 %v1405, %v1406
          %v1408 = vsel %vm414, %v1371, 0.0
          %v1409 = vadd.f32 %v1407, %v1408
          %v1410 = vsel %vm414, %v1372, 0.0
          %v1411 = vadd.f32 %v1409, %v1410
          %v1412 = vsel %vm414, %v1373, 0.0
          %v1413 = vadd.f32 %v1411, %v1412
          %v1414 = vsel %vm414, %v1374, 0.0
          %v1415 = vadd.f32 %v1413, %v1414
          %v1416 = vsel %vm414, %v1375, 0.0
          %v1417 = vadd.f32 %v1415, %v1416
          %v1418 = vsel %vm414, %v1376, 0.0
          %v1419 = vadd.f32 %v1417, %v1418
          %v1420 = vsel %vm414, %v1381, 0.0
          %v1421 = vadd.f32 %v1419, %v1420
          %v1422 = vsel %vm414, %v1382, 0.0
          %v1423 = vadd.f32 %v1421, %v1422
          %v1424 = vsel %vm414, %v1383, 0.0
          %v1425 = vadd.f32 %v1423, %v1424
          %v1426 = vsel %vm414, %v1384, 0.0
          %v1427 = vadd.f32 %v1425, %v1426
          %v1428 = vsel %vm414, %v1385, 0.0
          %v1429 = vadd.f32 %v1427, %v1428
          %v1430 = vsel %vm414, %v1386, 0.0
          %v1431 = vadd.f32 %v1429, %v1430
          %v1432 = vsel %vm414, %v1387, 0.0
          %v1433 = vadd.f32 %v1431, %v1432
          %v1434 = vsel %vm414, %v1388, 0.0
          %v1435 = vadd.f32 %v1433, %v1434
          %1436 = vadd.xlane.f32.xlu0 %v1435
          %v1437 = vpop.xlane.xlu0 %1436
          %v1438 = vld [vmem:[#allocation4] sm:$0x77]
          %v1439 = vld [vmem:[#allocation4 + $0x8] sm:$0x77]
          %v1440 = vld [vmem:[#allocation4 + $0x10] sm:$0x77]
          %v1441 = vld [vmem:[#allocation4 + $0x18] sm:$0x77]
          %v1442 = vld [vmem:[#allocation4 + $0x20] sm:$0x77]
          %v1443 = vld [vmem:[#allocation4 + $0x28] sm:$0x77]
          %v1444 = vld [vmem:[#allocation4 + $0x30] sm:$0x77]
          %v1445 = vld [vmem:[#allocation4 + $0x38] sm:$0x77]
          %1454 = vst [vmem:[#allocation1] ss:$2 sm:$0xff] %v1438
          %s1455 = scalar_lea.vmem [#allocation1], 16
          %1456 = vst [vmem:[%s1455] ss:$2 sm:$0xff] %v1439
          %s1457 = scalar_lea.vmem [#allocation1], 32
          %1458 = vst [vmem:[%s1457] ss:$2 sm:$0xff] %v1440
          %s1459 = scalar_lea.vmem [#allocation1], 48
          %1460 = vst [vmem:[%s1459] ss:$2 sm:$0xff] %v1441
          %v1461 = vld.sshfl [vmem:[#allocation1] sm:$0xff pattern:$0x75316420]
          %v1462 = vld.sshfl [vmem:[#allocation1 + $0x8] sm:$0xff pattern:$0x75316420]
          %v1463 = vld.sshfl [vmem:[#allocation1 + $0x10] sm:$0xff pattern:$0x75316420]
          %v1464 = vld.sshfl [vmem:[#allocation1 + $0x18] sm:$0xff pattern:$0x75316420]
          %v1465 = vld.sshfl [vmem:[#allocation1 + $0x20] sm:$0xff pattern:$0x75316420]
          %v1466 = vld.sshfl [vmem:[#allocation1 + $0x28] sm:$0xff pattern:$0x75316420]
          %v1467 = vld.sshfl [vmem:[#allocation1 + $0x30] sm:$0xff pattern:$0x75316420]
          %v1468 = vld.sshfl [vmem:[#allocation1 + $0x38] sm:$0xff pattern:$0x75316420]
          %1469 = vst [vmem:[#allocation1] ss:$2 sm:$0xff] %v1442
          %1470 = vst [vmem:[%s1455] ss:$2 sm:$0xff] %v1443
          %1471 = vst [vmem:[%s1457] ss:$2 sm:$0xff] %v1444
          %1472 = vst [vmem:[%s1459] ss:$2 sm:$0xff] %v1445
          %v1473 = vld.sshfl [vmem:[#allocation1] sm:$0xff pattern:$0x75316420]
          %v1474 = vld.sshfl [vmem:[#allocation1 + $0x8] sm:$0xff pattern:$0x75316420]
          %v1475 = vld.sshfl [vmem:[#allocation1 + $0x10] sm:$0xff pattern:$0x75316420]
          %v1476 = vld.sshfl [vmem:[#allocation1 + $0x18] sm:$0xff pattern:$0x75316420]
          %v1477 = vld.sshfl [vmem:[#allocation1 + $0x20] sm:$0xff pattern:$0x75316420]
          %v1478 = vld.sshfl [vmem:[#allocation1 + $0x28] sm:$0xff pattern:$0x75316420]
          %v1479 = vld.sshfl [vmem:[#allocation1 + $0x30] sm:$0xff pattern:$0x75316420]
          %v1480 = vld.sshfl [vmem:[#allocation1 + $0x38] sm:$0xff pattern:$0x75316420]
          %v1497 = vsel %vm414, %v1461, 0.0
          %v1498 = vsel %vm414, %v1462, 0.0
          %v1499 = vadd.f32 %v1497, %v1498
          %v1500 = vsel %vm414, %v1463, 0.0
          %v1501 = vadd.f32 %v1499, %v1500
          %v1502 = vsel %vm414, %v1464, 0.0
          %v1503 = vadd.f32 %v1501, %v1502
          %v1504 = vsel %vm414, %v1465, 0.0
          %v1505 = vadd.f32 %v1503, %v1504
          %v1506 = vsel %vm414, %v1466, 0.0
          %v1507 = vadd.f32 %v1505, %v1506
          %v1508 = vsel %vm414, %v1467, 0.0
          %v1509 = vadd.f32 %v1507, %v1508
          %v1510 = vsel %vm414, %v1468, 0.0
          %v1511 = vadd.f32 %v1509, %v1510
          %v1512 = vsel %vm414, %v1473, 0.0
          %v1513 = vadd.f32 %v1511, %v1512
          %v1514 = vsel %vm414, %v1474, 0.0
          %v1515 = vadd.f32 %v1513, %v1514
          %v1516 = vsel %vm414, %v1475, 0.0
          %v1517 = vadd.f32 %v1515, %v1516
          %v1518 = vsel %vm414, %v1476, 0.0
          %v1519 = vadd.f32 %v1517, %v1518
          %v1520 = vsel %vm414, %v1477, 0.0
          %v1521 = vadd.f32 %v1519, %v1520
          %v1522 = vsel %vm414, %v1478, 0.0
          %v1523 = vadd.f32 %v1521, %v1522
          %v1524 = vsel %vm414, %v1479, 0.0
          %v1525 = vadd.f32 %v1523, %v1524
          %v1526 = vsel %vm414, %v1480, 0.0
          %v1527 = vadd.f32 %v1525, %v1526
          %1528 = vadd.xlane.f32.xlu0 %v1527
          %v1529 = vpop.xlane.xlu0 %1528
          %v1530 = vadd.f32 %v1437, 1e-07
          %v1531 = vrcp.pop %v1530
          %v1532 = vmul.f32 %v1530, %v1531
          %v1533 = vsub.f32 1.0, %v1532
          %v1534 = vmul.f32 %v1531, %v1533
          %v1535 = vadd.f32 %v1531, %v1534
          %vm1536 = vweird.f32 %v1530
          %vm1537 = vweird.f32 %v1531
          %vm1538 = vmor %vm1536, %vm1537
          %v1539 = vsel %vm1538, %v1531, %v1535
          %v1540 = vand.u32 2147483647, %v1530
          %vm1541 = vcmp.eq.f32.partialorder %v1540, 8.507059e+37
          %v1542 = vand.u32 %v1530, 2147483648
          %v1543 = vor.u32 1.1754944e-38, %v1542
          %v1544 = vsel %vm1541, %v1543, %v1539
          %v1545 = vmul.f32 %v1345, %v1544
          %v1546 = vadd.f32 %v1529, 1e-07
          %v1547 = vrcp.pop %v1546
          %v1548 = vmul.f32 %v1546, %v1547
          %v1549 = vsub.f32 1.0, %v1548
          %v1550 = vmul.f32 %v1547, %v1549
          %v1551 = vadd.f32 %v1547, %v1550
          %vm1552 = vweird.f32 %v1546
          %vm1553 = vweird.f32 %v1547
          %vm1554 = vmor %vm1552, %vm1553
          %v1555 = vsel %vm1554, %v1547, %v1551
          %v1556 = vand.u32 2147483647, %v1546
          %vm1557 = vcmp.eq.f32.partialorder %v1556, 8.507059e+37
          %v1558 = vand.u32 %v1546, 2147483648
          %v1559 = vor.u32 1.1754944e-38, %v1558
          %v1560 = vsel %vm1557, %v1559, %v1555
          %v1561 = vmul.f32 %v1345, %v1560
          %v1562 = vmul.f32 %v1545, %v1561
          %v1563 = vmul.f32 %v1562, 2.0
          %v1564 = vadd.f32 %v1545, %v1561
          %v1565 = vadd.f32 %v1564, 1e-07
          %v1566 = vrcp.pop %v1565
          %v1567 = vmul.f32 %v1565, %v1566
          %v1568 = vsub.f32 1.0, %v1567
          %v1569 = vmul.f32 %v1566, %v1568
          %v1570 = vadd.f32 %v1566, %v1569
          %vm1571 = vweird.f32 %v1565
          %vm1572 = vweird.f32 %v1566
          %vm1573 = vmor %vm1571, %vm1572
          %v1574 = vsel %vm1573, %v1566, %v1570
          %v1575 = vand.u32 2147483647, %v1565
          %vm1576 = vcmp.eq.f32.partialorder %v1575, 8.507059e+37
          %v1577 = vand.u32 %v1565, 2147483648
          %v1578 = vor.u32 1.1754944e-38, %v1577
          %v1579 = vsel %vm1576, %v1578, %v1574
          %v1580 = vmul.f32 %v1563, %v1579
          %v1581 = vmax.f32 %v1580, 1e-07
          %v1582 = vmin.f32 %v1581, 0.9999999
          %vm1583 = vcmask 2048
          %v1584 = vsel %vm1583, %v1582, 0.0
          %1585 = vadd.xlane.f32.xlu0 %v1584
          %v1586 = vpop.xlane.xlu0 %1585
          %v1587 = vrot.slane %v1586, 4
          %v1588 = vadd.f32 %v1586, %v1587
          %v1589 = vrot.slane %v1588, 2
          %v1590 = vadd.f32 %v1588, %v1589
          %v1591 = vrot.slane %v1590, 1
          %v1592 = vadd.f32 %v1590, %v1591
          %s1593 = vtos %v1592
          %v1594 = vrcp.pop 3.0
          %v1595 = vmul.f32 3.0, %v1594
          %v1596 = vsub.f32 1.0, %v1595
          %v1597 = vmul.f32 %v1594, %v1596
          %v1598 = vadd.f32 %v1594, %v1597
          %vm1599 = vweird.f32 %v1594
          %v1600 = vsel %vm1599, %v1594, %v1598
          %s1601 = vtos %v1600
          %s1602 = smul.f32 %s1593, %s1601
          %s1603 = ssub.f32 1.0, %s1602
          %v1604 = vstv %s1603
          %vm1605 = vcmask 0
          %1606 = vst.msk [vmem:[#allocation10] sm:$0x1] %vm1605, %v1604
        $region44: #{tpu_custom_call.1} parent=27 // pred_fallthru
          _
        // Predicated region
        $region45: #{tpu_custom_call.1} parent=27 // pred_check
          %p1607 = pneg %p85
        $region46: #{tpu_custom_call.1} parent=27 // pred_check_branch
          %1609 = sbr.rel (%p1607) target = $region48
        $region47: #{tpu_custom_call.1} parent=27 // pred_region
          %1611 = vsyncadd [#allocation7], 0
          %s1613 = sshll.u32 [#allocation10], 4
          %s1614 = int_to_ptr.vmem [resolvable:$true] %s1613
          %s1615 = sshll.u32 %s2, 4
          %s1616 = int_to_ptr.hbm [resolvable:$true] %s1615
          %1618 = dma.vmem_to_hbm [thread:$0]  %s1614, 16, %s1616, [#allocation7]
        $region48: #{tpu_custom_call.1} parent=27 // pred_fallthru
          _
        // Predicated region
        $region49: #{tpu_custom_call.1} parent=27 // pred_check
          %p1619 = pneg %p85
        $region50: #{tpu_custom_call.1} parent=27 // pred_check_branch
          %1621 = sbr.rel (%p1619) target = $region52
        $region51: #{tpu_custom_call.1} parent=27 // pred_region
          %1623 = dma.done [#allocation7], 16
        $region52: #{tpu_custom_call.1} parent=27 // pred_fallthru
          _
      $region28: #{tpu_custom_call.1} parent=5 // pred_fallthru
        _
      %p1624 = scmp.le.s32.totalorder 2, %s15
      // Predicated region
      $region53: #{tpu_custom_call.1} parent=5 // pred_check
        %p1625 = pneg %p1624
      $region54: #{tpu_custom_call.1} parent=5 // pred_check_branch
        %1627 = sbr.rel (%p1625) target = $region56
      $region55: #{tpu_custom_call.1} parent=5 // pred_region
        %s1628 = ssub.s32 %s15, 2
      $region56: #{tpu_custom_call.1} parent=5 // pred_fallthru
        _
    $region6: #{tpu_custom_call.1} parent=1 // loop_footer
      %s19 = sadd.s32 1, %s15
    $region7: #{tpu_custom_call.1} parent=1 // loop_footer_branch
      %14 = sbr.rel target = $region3
    $region8: #{tpu_custom_call.1} parent=1 // loop_exit
      _
    %1629 = vsyncpa [#allocation6], 1
    %s1630 = scalar_lea.sflag [#allocation6], 1
    %1631 = vsyncpa %s1630, 1
    %1632 = vsyncpa [#allocation9], 1
    %s1633 = scalar_lea.sflag [#allocation9], 1
    %1634 = vsyncpa %s1633, 1
    %1635 = vsyncpa [#allocation7], 1
    %s1636 = scalar_lea.sflag [#allocation7], 1
    %1637 = vsyncpa %s1636, 1

</llo_original>
